<compile_context>
chip_gen: v7x
topology: tpu7x:2x2x1
jax: 0.10.0
libtpu: 0.0.40
codegen_flags: <defaults>
</compile_context>

<pallas_src>
import functools

import jax
import jax.numpy as jnp
from jax import lax
from jax.experimental import pallas as pl
from jax.experimental.pallas import tpu as pltpu


def _round_up(x, m):
    return (x + m - 1) // m * m


# ----------------------------------------------------------------------------
# Pallas kernel 1: fused (patches @ W) + bias + LeakyReLU(0.2), bf16 out
# ----------------------------------------------------------------------------
def _conv_leaky_kernel(p_ref, w_ref, b_ref, o_ref):
    # p_ref: (tm, K)  bf16 im2col patch tile
    # w_ref: (K, N)   bf16 reshaped conv weights (resident)
    # b_ref: (1, N)   f32 bias (resident)
    # o_ref: (tm, N)  bf16 output tile
    acc = jnp.dot(p_ref[...], w_ref[...], preferred_element_type=jnp.float32)
    acc = acc + b_ref[...]
    acc = jnp.where(acc >= 0.0, acc, 0.2 * acc)          # LeakyReLU(0.2) in f32
    o_ref[...] = acc.astype(o_ref.dtype)                  # bf16 writeback


def _pick_tm(M, K, tm_cap=1024):
    """Row tile: ~2 MiB bf16 patch tile per step, multiple of 16, >=2 steps."""
    tm = min(tm_cap, max(16, (2 << 20) // max(2 * K, 1)))
    tm = max(16, (tm // 16) * 16)
    tm = min(tm, _round_up(M, 16))
    # Guarantee >=2 grid steps (when M allows) so "parallel" shards the M axis
    # across v7x's two TensorCores; harmless on single-TC v5e/v6e.
    if _round_up(M, tm) == tm and M >= 32:
        tm = _round_up(-(-M // 2), 16)
    return tm


def _pallas_conv_leaky(patches, w2d, b_row):
    """Fused matmul + bias + LeakyReLU; bf16 in/out, f32 accumulate, M-tiled."""
    if patches.dtype != jnp.bfloat16:
        patches = patches.astype(jnp.bfloat16)
    M, K = patches.shape
    N = w2d.shape[1]

    tm = _pick_tm(M, K)
    m_pad = _round_up(M, tm)
    p = patches if m_pad == M else jnp.pad(patches, ((0, m_pad - M), (0, 0)))

    tile_bytes = tm * (K + N) * 2                      # bf16 patch + bf16 out tile
    resident_bytes = K * N * 2 + N * 4                 # bf16 weights + f32 bias
    vmem_limit = int(min(32 << 20, max(4 << 20, 4 * tile_bytes + 2 * resident_bytes)))

    cost = pl.CostEstimate(
        flops=2 * m_pad * K * N,
        transcendentals=0,
        bytes_accessed=(m_pad * K + K * N + m_pad * N) * 2 + N * 4,
    )

    out = pl.pallas_call(
        _conv_leaky_kernel,
        out_shape=jax.ShapeDtypeStruct((m_pad, N), jnp.bfloat16),
        grid=(m_pad // tm,),
        in_specs=[
            pl.BlockSpec((tm, K), lambda i: (i, 0)),   # patch rows stream over M
            pl.BlockSpec((K, N), lambda i: (0, 0)),    # weights stay resident
            pl.BlockSpec((1, N), lambda i: (0, 0)),    # bias stays resident
        ],
        out_specs=pl.BlockSpec((tm, N), lambda i: (i, 0)),
        compiler_params=pltpu.CompilerParams(
            dimension_semantics=("parallel",),
            vmem_limit_bytes=vmem_limit,
        ),
        cost_estimate=cost,
    )(p, w2d, b_row)

    return out if m_pad == M else out[:M]


# ----------------------------------------------------------------------------
# Pallas kernel 2: layer2 conv + LeakyReLU + fused adv/cls head (one launch)
# ----------------------------------------------------------------------------
def _layer2_head_kernel(p_ref, w2_ref, b2_ref, wh_ref, bh_ref, o_ref, act_ref,
                        *, taps, c_mid, nb):
    # p_ref : (taps*nb, K2)     bf16 layer2 patches, rows ordered (tap, batch)
    # w2_ref: (K2, c_mid)       bf16 layer2 conv weights
    # b2_ref: (1, c_mid)        f32
    # wh_ref: (taps*c_mid, Nh)  bf16 concatenated adv+cls head weights
    # bh_ref: (1, Nh)           f32
    # o_ref : (nb, Nh)          f32  [sigmoid(adv) | cls logits]
    # act_ref: (taps*nb, c_mid) f32  VMEM scratch — layer2 acts never hit HBM
    acc = jnp.dot(p_ref[...], w2_ref[...], preferred_element_type=jnp.float32)
    acc = acc + b2_ref[...]
    act_ref[...] = jnp.where(acc >= 0.0, acc, 0.2 * acc)

    nh = o_ref.shape[-1]
    head = jnp.broadcast_to(bh_ref[...], (nb, nh)).astype(jnp.float32)
    for s in range(taps):  # static, unrolled (taps == 16)
        rows = act_ref[pl.ds(s * nb, nb), :].astype(jnp.bfloat16)   # (nb, c_mid)
        w_s = wh_ref[pl.ds(s * c_mid, c_mid), :]                    # (c_mid, Nh)
        head = head + jnp.dot(rows, w_s, preferred_element_type=jnp.float32)

    # Numerically-stable sigmoid on the adv column (col 0); cls logits pass through.
    z = jnp.exp(-jnp.abs(head))
    r = pl.reciprocal(1.0 + z, approx=True)            # EUP slot — effectively free
    sig = jnp.clip(jnp.where(head >= 0.0, r, 1.0 - r), 0.0, 1.0)
    col = lax.broadcasted_iota(jnp.int32, head.shape, 1)
    o_ref[...] = jnp.where(col == 0, sig, head)


def _pallas_layer2_head(p2, w2, b2, wh, bh, *, taps, nb):
    if p2.dtype != jnp.bfloat16:
        p2 = p2.astype(jnp.bfloat16)
    m2, k2 = p2.shape
    c_mid = w2.shape[1]
    nh = wh.shape[1]
    assert m2 == taps * nb and wh.shape[0] == taps * c_mid

    kernel = functools.partial(_layer2_head_kernel, taps=taps, c_mid=c_mid, nb=nb)
    cost = pl.CostEstimate(
        flops=2 * m2 * k2 * c_mid + 2 * nb * taps * c_mid * nh,
        transcendentals=nb * nh,
        bytes_accessed=(m2 * k2 + k2 * c_mid + taps * c_mid * nh) * 2
        + (c_mid + nh) * 4 + nb * nh * 4,
    )
    # Whole-array blocks, single step: this tail is launch-overhead bound, so one
    # fused kernel replaces two grid=(1,) micro-matmuls plus a head im2col pass.
    # TODO(synk): tile over batch for very large nb (patch VMEM grows as nb*taps*K2).
    return pl.pallas_call(
        kernel,
        out_shape=jax.ShapeDtypeStruct((nb, nh), jnp.float32),
        scratch_shapes=[pltpu.VMEM((taps * nb, c_mid), jnp.float32)],
        cost_estimate=cost,
    )(p2, w2, b2, wh, bh)


# ----------------------------------------------------------------------------
# im2col glue (plain JAX, bf16): NHWC -> (rows, kh*kw*Cin)
# ----------------------------------------------------------------------------
def _im2col(x_nhwc, kh, kw, stride, pad, row_order="bhw"):
    B, H, W, C = x_nhwc.shape
    xp = jnp.pad(x_nhwc, ((0, 0), (pad, pad), (pad, pad), (0, 0)))
    OH = (H + 2 * pad - kh) // stride + 1
    OW = (W + 2 * pad - kw) // stride + 1
    cols = []
    for i in range(kh):
        for j in range(kw):
            cols.append(
                xp[:, i : i + stride * OH : stride, j : j + stride * OW : stride, :]
            )
    patches = jnp.stack(cols, axis=-2)                 # (B, OH, OW, kh*kw, C)
    if row_order == "hwb":                             # (tap-major, batch-minor)
        patches = jnp.transpose(patches, (1, 2, 0, 3, 4))
    return patches.reshape(-1, kh * kw * C), OH, OW


def _conv_leaky_block(x_nhwc, w2d, b_row, *, k=4, stride=2, pad=1):
    B = x_nhwc.shape[0]
    patches, OH, OW = _im2col(x_nhwc, k, k, stride, pad)
    out = _pallas_conv_leaky(patches, w2d, b_row)      # (B*OH*OW, Cout) bf16
    return out.reshape(B, OH, OW, -1)


# ----------------------------------------------------------------------------
# Parameters: raw (PyTorch-layout) init + one-time prep (hoisted out of forward)
# ----------------------------------------------------------------------------
def init_discriminator_params(key, nc, ndf, num_class):
    def conv_params(k, cout, cin, kh, kw):
        kw_, kb_ = jax.random.split(k)
        w = 0.02 * jax.random.normal(kw_, (cout, cin, kh, kw), jnp.float32)
        b = 0.01 * jax.random.normal(kb_, (cout,), jnp.float32)
        return w, b

    keys = jax.random.split(key, 5)
    return {
        "input_layer": conv_params(keys[0], ndf, nc, 4, 4),
        "layer1": conv_params(keys[1], ndf * 2, ndf, 4, 4),
        "layer2": conv_params(keys[2], ndf * 4, ndf * 2, 4, 4),
        "adv_layer": conv_params(keys[3], 1, ndf * 4, 4, 4),
        "cls_layer": conv_params(keys[4], num_class, ndf * 4, 4, 4),
    }


def prepare_discriminator_params(params):
    """One-time prep: OIHW -> (kh*kw*Cin, Cout) bf16 weights, (1, Cout) f32 bias,
    and adv/cls head weights concatenated into a single head matmul."""
    def prep(w, b):
        cout, cin, kh, kw = w.shape
        w2d = jnp.transpose(w, (2, 3, 1, 0)).reshape(kh * kw * cin, cout)
        return w2d.astype(jnp.bfloat16), b.reshape(1, cout).astype(jnp.float32)

    wa, ba = params["adv_layer"]
    wc, bc = params["cls_layer"]
    return {
        "input_layer": prep(*params["input_layer"]),
        "layer1": prep(*params["layer1"]),
        "layer2": prep(*params["layer2"]),
        "head": prep(jnp.concatenate([wa, wc], axis=0),
                     jnp.concatenate([ba, bc], axis=0)),
    }


# ----------------------------------------------------------------------------
# Forward
# ----------------------------------------------------------------------------
def discriminator_forward(params, x_nchw):
    # NCHW (PyTorch) -> NHWC, cast to bf16 ONCE before any im2col.
    x = jnp.transpose(x_nchw, (0, 2, 3, 1)).astype(jnp.bfloat16)
    B = x.shape[0]

    x = _conv_leaky_block(x, *params["input_layer"])   # (B, H/2, W/2, ndf)
    x = _conv_leaky_block(x, *params["layer1"])        # (B, H/4, W/4, 2ndf)

    # layer2 + adv/cls head fused: layer2's 4x4 output is the head's whole
    # receptive field, so the activations stay in VMEM scratch.
    p2, OH2, OW2 = _im2col(x, 4, 4, 2, 1, row_order="hwb")
    assert (OH2, OW2) == (4, 4), "adv/cls head expects a 4x4 layer2 output"
    w2, b2 = params["layer2"]
    wh, bh = params["head"]
    head = _pallas_layer2_head(p2, w2, b2, wh, bh, taps=OH2 * OW2, nb=B)

    adv = head[:, :1].reshape(B, 1, 1, 1)                        # sigmoid'd in-kernel
    cls = head[:, 1:].reshape(B, head.shape[1] - 1, 1, 1)        # raw logits
    return adv, cls


if __name__ == "__main__":
    num_class = 10
    nc = 3       # input image channels
    ndf = 8      # small base width for the demo
    B = 2
    H = W = 32   # 32 -> 16 -> 8 -> 4 (stride-2 convs), then 4x4 valid head -> 1x1

    key = jax.random.PRNGKey(0)
    k_params, k_x = jax.random.split(key)

    raw_params = init_discriminator_params(k_params, nc, ndf, num_class)
    params = prepare_discriminator_params(raw_params)   # hoisted one-time prep
    x = jax.random.normal(k_x, (B, nc, H, W), jnp.float32)  # NCHW input

    adv, cls = jax.jit(discriminator_forward)(params, x)
    jax.block_until_ready((adv, cls))

    assert adv.shape == (B, 1, 1, 1), adv.shape
    assert cls.shape == (B, num_class, 1, 1), cls.shape
    assert bool(jnp.all((adv >= 0.0) & (adv <= 1.0)))
    assert bool(jnp.all(jnp.isfinite(cls)))

    print("KERNEL_OK")
</pallas_src>

<mosaic_0001>
module attributes {stable_mosaic.version = 11 : i64} {
  func.func @_conv_leaky_kernel(%arg0: i32, %arg1: memref<256x48xbf16, #tpu.memory_space<vmem>>, %arg2: memref<48x8xbf16, #tpu.memory_space<vmem>>, %arg3: memref<1x8xf32, #tpu.memory_space<vmem>>, %arg4: memref<256x8xbf16, #tpu.memory_space<vmem>>) attributes {dimension_semantics = [#tpu.dimension_semantics<parallel>], iteration_bounds = array<i64: 2>, scalar_prefetch = 0 : i64, scratch_operands = 0 : i64, tpu.core_type = #tpu.core_type<tc>, window_params = [{transform_indices = @transform_0, window_bounds = array<i64: 256, 48>}, {pipeline_mode = #tpu.pipeline_mode<synchronous>, transform_indices = @transform_1, window_bounds = array<i64: 48, 8>}, {pipeline_mode = #tpu.pipeline_mode<synchronous>, transform_indices = @transform_2, window_bounds = array<i64: 1, 8>}, {transform_indices = @transform_3, window_bounds = array<i64: 256, 8>}]} {
    %c0 = arith.constant 0 : index
    %c0_0 = arith.constant 0 : index
    %0 = vector.load %arg1[%c0, %c0_0] : memref<256x48xbf16, #tpu.memory_space<vmem>>, vector<256x48xbf16>
    %c0_1 = arith.constant 0 : index
    %c0_2 = arith.constant 0 : index
    %1 = vector.load %arg2[%c0_1, %c0_2] : memref<48x8xbf16, #tpu.memory_space<vmem>>, vector<48x8xbf16>
    %cst = arith.constant dense<0.000000e+00> : vector<256x8xf32>
    %2 = tpu.matmul %0, %1, %cst {dimension_numbers = #tpu.dot_dimension_numbers<[1], [0], [0], [1], [0, 0, 1, 1], [], []>} : vector<256x48xbf16>, vector<48x8xbf16>, vector<256x8xf32> -> vector<256x8xf32>
    %c0_3 = arith.constant 0 : index
    %c0_4 = arith.constant 0 : index
    %3 = vector.load %arg3[%c0_3, %c0_4] : memref<1x8xf32, #tpu.memory_space<vmem>>, vector<1x8xf32>
    %4 = vector.broadcast %3 : vector<1x8xf32> to vector<256x8xf32>
    %5 = arith.addf %2, %4 : vector<256x8xf32>
    %cst_5 = arith.constant 0.000000e+00 : f32
    %6 = vector.broadcast %cst_5 : f32 to vector<256x8xf32>
    %7 = arith.cmpf oge, %5, %6 : vector<256x8xf32>
    %cst_6 = arith.constant 2.000000e-01 : f32
    %8 = vector.broadcast %cst_6 : f32 to vector<256x8xf32>
    %9 = arith.mulf %8, %5 : vector<256x8xf32>
    %10 = arith.select %7, %5, %9 : vector<256x8xi1>, vector<256x8xf32>
    %11 = arith.truncf %10 : vector<256x8xf32> to vector<256x8xbf16>
    %c0_7 = arith.constant 0 : index
    %c0_8 = arith.constant 0 : index
    %12 = vector.load %arg4[%c0_7, %c0_8] : memref<256x8xbf16, #tpu.memory_space<vmem>>, vector<256x8xbf16>
    tpu.vector_store %arg4[%c0_7, %c0_8], %11 {strides = array<i32>} : memref<256x8xbf16, #tpu.memory_space<vmem>>, vector<256x8xbf16>,
    return
  }
  func.func @transform_0(%arg0: i32) -> (i32, i32) {
    %c0_i32 = arith.constant 0 : i32
    %c0_i32_0 = arith.constant 0 : i32
    return %arg0, %c0_i32 : i32, i32
  }
  func.func @transform_1(%arg0: i32) -> (i32, i32) {
    %c0_i32 = arith.constant 0 : i32
    %c0_i32_0 = arith.constant 0 : i32
    %c0_i32_1 = arith.constant 0 : i32
    return %c0_i32, %c0_i32_0 : i32, i32
  }
  func.func @transform_2(%arg0: i32) -> (i32, i32) {
    %c0_i32 = arith.constant 0 : i32
    %c0_i32_0 = arith.constant 0 : i32
    %c0_i32_1 = arith.constant 0 : i32
    return %c0_i32, %c0_i32_0 : i32, i32
  }
  func.func @transform_3(%arg0: i32) -> (i32, i32) {
    %c0_i32 = arith.constant 0 : i32
    %c0_i32_0 = arith.constant 0 : i32
    return %arg0, %c0_i32 : i32, i32
  }
}

module attributes {stable_mosaic.version = 11 : i64} {
  func.func @_conv_leaky_kernel(%arg0: i32, %arg1: memref<64x128xbf16, #tpu.memory_space<vmem>>, %arg2: memref<128x16xbf16, #tpu.memory_space<vmem>>, %arg3: memref<1x16xf32, #tpu.memory_space<vmem>>, %arg4: memref<64x16xbf16, #tpu.memory_space<vmem>>) attributes {dimension_semantics = [#tpu.dimension_semantics<parallel>], iteration_bounds = array<i64: 2>, scalar_prefetch = 0 : i64, scratch_operands = 0 : i64, tpu.core_type = #tpu.core_type<tc>, window_params = [{transform_indices = @transform_0, window_bounds = array<i64: 64, 128>}, {pipeline_mode = #tpu.pipeline_mode<synchronous>, transform_indices = @transform_1, window_bounds = array<i64: 128, 16>}, {pipeline_mode = #tpu.pipeline_mode<synchronous>, transform_indices = @transform_2, window_bounds = array<i64: 1, 16>}, {transform_indices = @transform_3, window_bounds = array<i64: 64, 16>}]} {
    %c0 = arith.constant 0 : index
    %c0_0 = arith.constant 0 : index
    %0 = vector.load %arg1[%c0, %c0_0] : memref<64x128xbf16, #tpu.memory_space<vmem>>, vector<64x128xbf16>
    %c0_1 = arith.constant 0 : index
    %c0_2 = arith.constant 0 : index
    %1 = vector.load %arg2[%c0_1, %c0_2] : memref<128x16xbf16, #tpu.memory_space<vmem>>, vector<128x16xbf16>
    %cst = arith.constant dense<0.000000e+00> : vector<64x16xf32>
    %2 = tpu.matmul %0, %1, %cst {dimension_numbers = #tpu.dot_dimension_numbers<[1], [0], [0], [1], [0, 0, 1, 1], [], []>} : vector<64x128xbf16>, vector<128x16xbf16>, vector<64x16xf32> -> vector<64x16xf32>
    %c0_3 = arith.constant 0 : index
    %c0_4 = arith.constant 0 : index
    %3 = vector.load %arg3[%c0_3, %c0_4] : memref<1x16xf32, #tpu.memory_space<vmem>>, vector<1x16xf32>
    %4 = vector.broadcast %3 : vector<1x16xf32> to vector<64x16xf32>
    %5 = arith.addf %2, %4 : vector<64x16xf32>
    %cst_5 = arith.constant 0.000000e+00 : f32
    %6 = vector.broadcast %cst_5 : f32 to vector<64x16xf32>
    %7 = arith.cmpf oge, %5, %6 : vector<64x16xf32>
    %cst_6 = arith.constant 2.000000e-01 : f32
    %8 = vector.broadcast %cst_6 : f32 to vector<64x16xf32>
    %9 = arith.mulf %8, %5 : vector<64x16xf32>
    %10 = arith.select %7, %5, %9 : vector<64x16xi1>, vector<64x16xf32>
    %11 = arith.truncf %10 : vector<64x16xf32> to vector<64x16xbf16>
    %c0_7 = arith.constant 0 : index
    %c0_8 = arith.constant 0 : index
    %12 = vector.load %arg4[%c0_7, %c0_8] : memref<64x16xbf16, #tpu.memory_space<vmem>>, vector<64x16xbf16>
    tpu.vector_store %arg4[%c0_7, %c0_8], %11 {strides = array<i32>} : memref<64x16xbf16, #tpu.memory_space<vmem>>, vector<64x16xbf16>,
    return
  }
  func.func @transform_0(%arg0: i32) -> (i32, i32) {
    %c0_i32 = arith.constant 0 : i32
    %c0_i32_0 = arith.constant 0 : i32
    return %arg0, %c0_i32 : i32, i32
  }
  func.func @transform_1(%arg0: i32) -> (i32, i32) {
    %c0_i32 = arith.constant 0 : i32
    %c0_i32_0 = arith.constant 0 : i32
    %c0_i32_1 = arith.constant 0 : i32
    return %c0_i32, %c0_i32_0 : i32, i32
  }
  func.func @transform_2(%arg0: i32) -> (i32, i32) {
    %c0_i32 = arith.constant 0 : i32
    %c0_i32_0 = arith.constant 0 : i32
    %c0_i32_1 = arith.constant 0 : i32
    return %c0_i32, %c0_i32_0 : i32, i32
  }
  func.func @transform_3(%arg0: i32) -> (i32, i32) {
    %c0_i32 = arith.constant 0 : i32
    %c0_i32_0 = arith.constant 0 : i32
    return %arg0, %c0_i32 : i32, i32
  }
}

module attributes {stable_mosaic.version = 11 : i64} {
  func.func @_layer2_head_kernel(%arg0: memref<32x256xbf16, #tpu.memory_space<vmem>>, %arg1: memref<256x32xbf16, #tpu.memory_space<vmem>>, %arg2: memref<1x32xf32, #tpu.memory_space<vmem>>, %arg3: memref<512x11xbf16, #tpu.memory_space<vmem>>, %arg4: memref<1x11xf32, #tpu.memory_space<vmem>>, %arg5: memref<2x11xf32, #tpu.memory_space<vmem>>, %arg6: memref<32x32xf32, #tpu.memory_space<vmem>>) attributes {dimension_semantics = [], scalar_prefetch = 0 : i64, scratch_operands = 1 : i64, tpu.core_type = #tpu.core_type<tc>} {
    %c0 = arith.constant 0 : index
    %c0_0 = arith.constant 0 : index
    %0 = vector.load %arg0[%c0, %c0_0] : memref<32x256xbf16, #tpu.memory_space<vmem>>, vector<32x256xbf16>
    %c0_1 = arith.constant 0 : index
    %c0_2 = arith.constant 0 : index
    %1 = vector.load %arg1[%c0_1, %c0_2] : memref<256x32xbf16, #tpu.memory_space<vmem>>, vector<256x32xbf16>
    %cst = arith.constant dense<0.000000e+00> : vector<32x32xf32>
    %2 = tpu.matmul %0, %1, %cst {dimension_numbers = #tpu.dot_dimension_numbers<[1], [0], [0], [1], [0, 0, 1, 1], [], []>} : vector<32x256xbf16>, vector<256x32xbf16>, vector<32x32xf32> -> vector<32x32xf32>
    %c0_3 = arith.constant 0 : index
    %c0_4 = arith.constant 0 : index
    %3 = vector.load %arg2[%c0_3, %c0_4] : memref<1x32xf32, #tpu.memory_space<vmem>>, vector<1x32xf32>
    %4 = vector.broadcast %3 : vector<1x32xf32> to vector<32x32xf32>
    %5 = arith.addf %2, %4 : vector<32x32xf32>
    %cst_5 = arith.constant 0.000000e+00 : f32
    %6 = vector.broadcast %cst_5 : f32 to vector<32x32xf32>
    %7 = arith.cmpf oge, %5, %6 : vector<32x32xf32>
    %cst_6 = arith.constant 2.000000e-01 : f32
    %8 = vector.broadcast %cst_6 : f32 to vector<32x32xf32>
    %9 = arith.mulf %8, %5 : vector<32x32xf32>
    %10 = arith.select %7, %5, %9 : vector<32x32xi1>, vector<32x32xf32>
    %c0_7 = arith.constant 0 : index
    %c0_8 = arith.constant 0 : index
    %11 = vector.load %arg6[%c0_7, %c0_8] : memref<32x32xf32, #tpu.memory_space<vmem>>, vector<32x32xf32>
    tpu.vector_store %arg6[%c0_7, %c0_8], %10 {strides = array<i32>} : memref<32x32xf32, #tpu.memory_space<vmem>>, vector<32x32xf32>,
    %c0_9 = arith.constant 0 : index
    %c0_10 = arith.constant 0 : index
    %12 = vector.load %arg4[%c0_9, %c0_10] : memref<1x11xf32, #tpu.memory_space<vmem>>, vector<1x11xf32>
    %13 = vector.shape_cast %12 : vector<1x11xf32> to vector<1x11xf32>
    %14 = vector.broadcast %13 : vector<1x11xf32> to vector<2x11xf32>
    %c0_11 = arith.constant 0 : index
    %c0_12 = arith.constant 0 : index
    %15 = vector.load %arg6[%c0_11, %c0_12] : memref<32x32xf32, #tpu.memory_space<vmem>>, vector<2x32xf32>
    %16 = arith.truncf %15 : vector<2x32xf32> to vector<2x32xbf16>
    %c0_13 = arith.constant 0 : index
    %c0_14 = arith.constant 0 : index
    %17 = vector.load %arg3[%c0_13, %c0_14] : memref<512x11xbf16, #tpu.memory_space<vmem>>, vector<32x11xbf16>
    %cst_15 = arith.constant dense<0.000000e+00> : vector<2x11xf32>
    %18 = tpu.matmul %16, %17, %cst_15 {dimension_numbers = #tpu.dot_dimension_numbers<[1], [0], [0], [1], [0, 0, 1, 1], [], []>} : vector<2x32xbf16>, vector<32x11xbf16>, vector<2x11xf32> -> vector<2x11xf32>
    %19 = arith.addf %14, %18 : vector<2x11xf32>
    %c2 = arith.constant 2 : index
    %c0_16 = arith.constant 0 : index
    %20 = vector.load %arg6[%c2, %c0_16] : memref<32x32xf32, #tpu.memory_space<vmem>>, vector<2x32xf32>
    %21 = arith.truncf %20 : vector<2x32xf32> to vector<2x32xbf16>
    %c32 = arith.constant 32 : index
    %c0_17 = arith.constant 0 : index
    %22 = vector.load %arg3[%c32, %c0_17] : memref<512x11xbf16, #tpu.memory_space<vmem>>, vector<32x11xbf16>
    %cst_18 = arith.constant dense<0.000000e+00> : vector<2x11xf32>
    %23 = tpu.matmul %21, %22, %cst_18 {dimension_numbers = #tpu.dot_dimension_numbers<[1], [0], [0], [1], [0, 0, 1, 1], [], []>} : vector<2x32xbf16>, vector<32x11xbf16>, vector<2x11xf32> -> vector<2x11xf32>
    %24 = arith.addf %19, %23 : vector<2x11xf32>
    %c4 = arith.constant 4 : index
    %c0_19 = arith.constant 0 : index
    %25 = vector.load %arg6[%c4, %c0_19] : memref<32x32xf32, #tpu.memory_space<vmem>>, vector<2x32xf32>
    %26 = arith.truncf %25 : vector<2x32xf32> to vector<2x32xbf16>
    %c64 = arith.constant 64 : index
    %c0_20 = arith.constant 0 : index
    %27 = vector.load %arg3[%c64, %c0_20] : memref<512x11xbf16, #tpu.memory_space<vmem>>, vector<32x11xbf16>
    %cst_21 = arith.constant dense<0.000000e+00> : vector<2x11xf32>
    %28 = tpu.matmul %26, %27, %cst_21 {dimension_numbers = #tpu.dot_dimension_numbers<[1], [0], [0], [1], [0, 0, 1, 1], [], []>} : vector<2x32xbf16>, vector<32x11xbf16>, vector<2x11xf32> -> vector<2x11xf32>
    %29 = arith.addf %24, %28 : vector<2x11xf32>
    %c6 = arith.constant 6 : index
    %c0_22 = arith.constant 0 : index
    %30 = vector.load %arg6[%c6, %c0_22] : memref<32x32xf32, #tpu.memory_space<vmem>>, vector<2x32xf32>
    %31 = arith.truncf %30 : vector<2x32xf32> to vector<2x32xbf16>
    %c96 = arith.constant 96 : index
    %c0_23 = arith.constant 0 : index
    %32 = vector.load %arg3[%c96, %c0_23] : memref<512x11xbf16, #tpu.memory_space<vmem>>, vector<32x11xbf16>
    %cst_24 = arith.constant dense<0.000000e+00> : vector<2x11xf32>
    %33 = tpu.matmul %31, %32, %cst_24 {dimension_numbers = #tpu.dot_dimension_numbers<[1], [0], [0], [1], [0, 0, 1, 1], [], []>} : vector<2x32xbf16>, vector<32x11xbf16>, vector<2x11xf32> -> vector<2x11xf32>
    %34 = arith.addf %29, %33 : vector<2x11xf32>
    %c8 = arith.constant 8 : index
    %c0_25 = arith.constant 0 : index
    %35 = vector.load %arg6[%c8, %c0_25] : memref<32x32xf32, #tpu.memory_space<vmem>>, vector<2x32xf32>
    %36 = arith.truncf %35 : vector<2x32xf32> to vector<2x32xbf16>
    %c128 = arith.constant 128 : index
    %c0_26 = arith.constant 0 : index
    %37 = vector.load %arg3[%c128, %c0_26] : memref<512x11xbf16, #tpu.memory_space<vmem>>, vector<32x11xbf16>
    %cst_27 = arith.constant dense<0.000000e+00> : vector<2x11xf32>
    %38 = tpu.matmul %36, %37, %cst_27 {dimension_numbers = #tpu.dot_dimension_numbers<[1], [0], [0], [1], [0, 0, 1, 1], [], []>} : vector<2x32xbf16>, vector<32x11xbf16>, vector<2x11xf32> -> vector<2x11xf32>
    %39 = arith.addf %34, %38 : vector<2x11xf32>
    %c10 = arith.constant 10 : index
    %c0_28 = arith.constant 0 : index
    %40 = vector.load %arg6[%c10, %c0_28] : memref<32x32xf32, #tpu.memory_space<vmem>>, vector<2x32xf32>
    %41 = arith.truncf %40 : vector<2x32xf32> to vector<2x32xbf16>
    %c160 = arith.constant 160 : index
    %c0_29 = arith.constant 0 : index
    %42 = vector.load %arg3[%c160, %c0_29] : memref<512x11xbf16, #tpu.memory_space<vmem>>, vector<32x11xbf16>
    %cst_30 = arith.constant dense<0.000000e+00> : vector<2x11xf32>
    %43 = tpu.matmul %41, %42, %cst_30 {dimension_numbers = #tpu.dot_dimension_numbers<[1], [0], [0], [1], [0, 0, 1, 1], [], []>} : vector<2x32xbf16>, vector<32x11xbf16>, vector<2x11xf32> -> vector<2x11xf32>
    %44 = arith.addf %39, %43 : vector<2x11xf32>
    %c12 = arith.constant 12 : index
    %c0_31 = arith.constant 0 : index
    %45 = vector.load %arg6[%c12, %c0_31] : memref<32x32xf32, #tpu.memory_space<vmem>>, vector<2x32xf32>
    %46 = arith.truncf %45 : vector<2x32xf32> to vector<2x32xbf16>
    %c192 = arith.constant 192 : index
    %c0_32 = arith.constant 0 : index
    %47 = vector.load %arg3[%c192, %c0_32] : memref<512x11xbf16, #tpu.memory_space<vmem>>, vector<32x11xbf16>
    %cst_33 = arith.constant dense<0.000000e+00> : vector<2x11xf32>
    %48 = tpu.matmul %46, %47, %cst_33 {dimension_numbers = #tpu.dot_dimension_numbers<[1], [0], [0], [1], [0, 0, 1, 1], [], []>} : vector<2x32xbf16>, vector<32x11xbf16>, vector<2x11xf32> -> vector<2x11xf32>
    %49 = arith.addf %44, %48 : vector<2x11xf32>
    %c14 = arith.constant 14 : index
    %c0_34 = arith.constant 0 : index
    %50 = vector.load %arg6[%c14, %c0_34] : memref<32x32xf32, #tpu.memory_space<vmem>>, vector<2x32xf32>
    %51 = arith.truncf %50 : vector<2x32xf32> to vector<2x32xbf16>
    %c224 = arith.constant 224 : index
    %c0_35 = arith.constant 0 : index
    %52 = vector.load %arg3[%c224, %c0_35] : memref<512x11xbf16, #tpu.memory_space<vmem>>, vector<32x11xbf16>
    %cst_36 = arith.constant dense<0.000000e+00> : vector<2x11xf32>
    %53 = tpu.matmul %51, %52, %cst_36 {dimension_numbers = #tpu.dot_dimension_numbers<[1], [0], [0], [1], [0, 0, 1, 1], [], []>} : vector<2x32xbf16>, vector<32x11xbf16>, vector<2x11xf32> -> vector<2x11xf32>
    %54 = arith.addf %49, %53 : vector<2x11xf32>
    %c16 = arith.constant 16 : index
    %c0_37 = arith.constant 0 : index
    %55 = vector.load %arg6[%c16, %c0_37] : memref<32x32xf32, #tpu.memory_space<vmem>>, vector<2x32xf32>
    %56 = arith.truncf %55 : vector<2x32xf32> to vector<2x32xbf16>
    %c256 = arith.constant 256 : index
    %c0_38 = arith.constant 0 : index
    %57 = vector.load %arg3[%c256, %c0_38] : memref<512x11xbf16, #tpu.memory_space<vmem>>, vector<32x11xbf16>
    %cst_39 = arith.constant dense<0.000000e+00> : vector<2x11xf32>
    %58 = tpu.matmul %56, %57, %cst_39 {dimension_numbers = #tpu.dot_dimension_numbers<[1], [0], [0], [1], [0, 0, 1, 1], [], []>} : vector<2x32xbf16>, vector<32x11xbf16>, vector<2x11xf32> -> vector<2x11xf32>
    %59 = arith.addf %54, %58 : vector<2x11xf32>
    %c18 = arith.constant 18 : index
    %c0_40 = arith.constant 0 : index
    %60 = vector.load %arg6[%c18, %c0_40] : memref<32x32xf32, #tpu.memory_space<vmem>>, vector<2x32xf32>
    %61 = arith.truncf %60 : vector<2x32xf32> to vector<2x32xbf16>
    %c288 = arith.constant 288 : index
    %c0_41 = arith.constant 0 : index
    %62 = vector.load %arg3[%c288, %c0_41] : memref<512x11xbf16, #tpu.memory_space<vmem>>, vector<32x11xbf16>
    %cst_42 = arith.constant dense<0.000000e+00> : vector<2x11xf32>
    %63 = tpu.matmul %61, %62, %cst_42 {dimension_numbers = #tpu.dot_dimension_numbers<[1], [0], [0], [1], [0, 0, 1, 1], [], []>} : vector<2x32xbf16>, vector<32x11xbf16>, vector<2x11xf32> -> vector<2x11xf32>
    %64 = arith.addf %59, %63 : vector<2x11xf32>
    %c20 = arith.constant 20 : index
    %c0_43 = arith.constant 0 : index
    %65 = vector.load %arg6[%c20, %c0_43] : memref<32x32xf32, #tpu.memory_space<vmem>>, vector<2x32xf32>
    %66 = arith.truncf %65 : vector<2x32xf32> to vector<2x32xbf16>
    %c320 = arith.constant 320 : index
    %c0_44 = arith.constant 0 : index
    %67 = vector.load %arg3[%c320, %c0_44] : memref<512x11xbf16, #tpu.memory_space<vmem>>, vector<32x11xbf16>
    %cst_45 = arith.constant dense<0.000000e+00> : vector<2x11xf32>
    %68 = tpu.matmul %66, %67, %cst_45 {dimension_numbers = #tpu.dot_dimension_numbers<[1], [0], [0], [1], [0, 0, 1, 1], [], []>} : vector<2x32xbf16>, vector<32x11xbf16>, vector<2x11xf32> -> vector<2x11xf32>
    %69 = arith.addf %64, %68 : vector<2x11xf32>
    %c22 = arith.constant 22 : index
    %c0_46 = arith.constant 0 : index
    %70 = vector.load %arg6[%c22, %c0_46] : memref<32x32xf32, #tpu.memory_space<vmem>>, vector<2x32xf32>
    %71 = arith.truncf %70 : vector<2x32xf32> to vector<2x32xbf16>
    %c352 = arith.constant 352 : index
    %c0_47 = arith.constant 0 : index
    %72 = vector.load %arg3[%c352, %c0_47] : memref<512x11xbf16, #tpu.memory_space<vmem>>, vector<32x11xbf16>
    %cst_48 = arith.constant dense<0.000000e+00> : vector<2x11xf32>
    %73 = tpu.matmul %71, %72, %cst_48 {dimension_numbers = #tpu.dot_dimension_numbers<[1], [0], [0], [1], [0, 0, 1, 1], [], []>} : vector<2x32xbf16>, vector<32x11xbf16>, vector<2x11xf32> -> vector<2x11xf32>
    %74 = arith.addf %69, %73 : vector<2x11xf32>
    %c24 = arith.constant 24 : index
    %c0_49 = arith.constant 0 : index
    %75 = vector.load %arg6[%c24, %c0_49] : memref<32x32xf32, #tpu.memory_space<vmem>>, vector<2x32xf32>
    %76 = arith.truncf %75 : vector<2x32xf32> to vector<2x32xbf16>
    %c384 = arith.constant 384 : index
    %c0_50 = arith.constant 0 : index
    %77 = vector.load %arg3[%c384, %c0_50] : memref<512x11xbf16, #tpu.memory_space<vmem>>, vector<32x11xbf16>
    %cst_51 = arith.constant dense<0.000000e+00> : vector<2x11xf32>
    %78 = tpu.matmul %76, %77, %cst_51 {dimension_numbers = #tpu.dot_dimension_numbers<[1], [0], [0], [1], [0, 0, 1, 1], [], []>} : vector<2x32xbf16>, vector<32x11xbf16>, vector<2x11xf32> -> vector<2x11xf32>
    %79 = arith.addf %74, %78 : vector<2x11xf32>
    %c26 = arith.constant 26 : index
    %c0_52 = arith.constant 0 : index
    %80 = vector.load %arg6[%c26, %c0_52] : memref<32x32xf32, #tpu.memory_space<vmem>>, vector<2x32xf32>
    %81 = arith.truncf %80 : vector<2x32xf32> to vector<2x32xbf16>
    %c416 = arith.constant 416 : index
    %c0_53 = arith.constant 0 : index
    %82 = vector.load %arg3[%c416, %c0_53] : memref<512x11xbf16, #tpu.memory_space<vmem>>, vector<32x11xbf16>
    %cst_54 = arith.constant dense<0.000000e+00> : vector<2x11xf32>
    %83 = tpu.matmul %81, %82, %cst_54 {dimension_numbers = #tpu.dot_dimension_numbers<[1], [0], [0], [1], [0, 0, 1, 1], [], []>} : vector<2x32xbf16>, vector<32x11xbf16>, vector<2x11xf32> -> vector<2x11xf32>
    %84 = arith.addf %79, %83 : vector<2x11xf32>
    %c28 = arith.constant 28 : index
    %c0_55 = arith.constant 0 : index
    %85 = vector.load %arg6[%c28, %c0_55] : memref<32x32xf32, #tpu.memory_space<vmem>>, vector<2x32xf32>
    %86 = arith.truncf %85 : vector<2x32xf32> to vector<2x32xbf16>
    %c448 = arith.constant 448 : index
    %c0_56 = arith.constant 0 : index
    %87 = vector.load %arg3[%c448, %c0_56] : memref<512x11xbf16, #tpu.memory_space<vmem>>, vector<32x11xbf16>
    %cst_57 = arith.constant dense<0.000000e+00> : vector<2x11xf32>
    %88 = tpu.matmul %86, %87, %cst_57 {dimension_numbers = #tpu.dot_dimension_numbers<[1], [0], [0], [1], [0, 0, 1, 1], [], []>} : vector<2x32xbf16>, vector<32x11xbf16>, vector<2x11xf32> -> vector<2x11xf32>
    %89 = arith.addf %84, %88 : vector<2x11xf32>
    %c30 = arith.constant 30 : index
    %c0_58 = arith.constant 0 : index
    %90 = vector.load %arg6[%c30, %c0_58] : memref<32x32xf32, #tpu.memory_space<vmem>>, vector<2x32xf32>
    %91 = arith.truncf %90 : vector<2x32xf32> to vector<2x32xbf16>
    %c480 = arith.constant 480 : index
    %c0_59 = arith.constant 0 : index
    %92 = vector.load %arg3[%c480, %c0_59] : memref<512x11xbf16, #tpu.memory_space<vmem>>, vector<32x11xbf16>
    %cst_60 = arith.constant dense<0.000000e+00> : vector<2x11xf32>
    %93 = tpu.matmul %91, %92, %cst_60 {dimension_numbers = #tpu.dot_dimension_numbers<[1], [0], [0], [1], [0, 0, 1, 1], [], []>} : vector<2x32xbf16>, vector<32x11xbf16>, vector<2x11xf32> -> vector<2x11xf32>
    %94 = arith.addf %89, %93 : vector<2x11xf32>
    %95 = math.absf %94 : vector<2x11xf32>
    %cst_61 = arith.constant 0.000000e+00 : f32
    %96 = vector.broadcast %cst_61 : f32 to vector<2x11xf32>
    %97 = arith.subf %96, %95 : vector<2x11xf32>
    %98 = math.exp %97 : vector<2x11xf32>
    %cst_62 = arith.constant 1.000000e+00 : f32
    %99 = vector.broadcast %cst_62 : f32 to vector<2x11xf32>
    %100 = arith.addf %99, %98 : vector<2x11xf32>
    %101 = tpu.reciprocal %100 {approx = true} : vector<2x11xf32> -> vector<2x11xf32>
    %cst_63 = arith.constant 0.000000e+00 : f32
    %102 = vector.broadcast %cst_63 : f32 to vector<2x11xf32>
    %103 = arith.cmpf oge, %94, %102 : vector<2x11xf32>
    %cst_64 = arith.constant 1.000000e+00 : f32
    %104 = vector.broadcast %cst_64 : f32 to vector<2x11xf32>
    %105 = arith.subf %104, %101 : vector<2x11xf32>
    %106 = arith.select %103, %101, %105 : vector<2x11xi1>, vector<2x11xf32>
    %cst_65 = arith.constant 0.000000e+00 : f32
    %cst_66 = arith.constant 1.000000e+00 : f32
    %107 = vector.broadcast %cst_65 : f32 to vector<2x11xf32>
    %108 = arith.maximumf %107, %106 : vector<2x11xf32>
    %109 = vector.broadcast %cst_66 : f32 to vector<2x11xf32>
    %110 = arith.minimumf %109, %108 : vector<2x11xf32>
    %111 = tpu.iota {dimensions = array<i32: 1>} : vector<2x11xi32>
    %c0_i32 = arith.constant 0 : i32
    %112 = vector.broadcast %c0_i32 : i32 to vector<2x11xi32>
    %113 = arith.cmpi eq, %111, %112 : vector<2x11xi32>
    %114 = arith.select %113, %110, %94 : vector<2x11xi1>, vector<2x11xf32>
    %c0_67 = arith.constant 0 : index
    %c0_68 = arith.constant 0 : index
    %115 = vector.load %arg5[%c0_67, %c0_68] : memref<2x11xf32, #tpu.memory_space<vmem>>, vector<2x11xf32>
    tpu.vector_store %arg5[%c0_67, %c0_68], %114 {strides = array<i32>} : memref<2x11xf32, #tpu.memory_space<vmem>>, vector<2x11xf32>,
    return
  }
}

</mosaic_0001>

<llo_original>
// kernel: discriminator_forward.3
$region0: #{discriminator_forward.3}
  #allocation0 [shape = 'u32[]', space=smem, size = 0x4, offset = 0x4, fixed_abs, tag = 'smem constant byte address 0x4 - core index']
  #allocation1 [shape = 'u32[144,128]{1,0:T(1,128)}', space=vmem, size = 0x12000, scoped, tag = 'internal scratch']
  %s0 = inlined_call_operand.vmem [shape: bf16[512,48], index: 0, kind: input, shape index: {}]
  %s1 = inlined_call_operand.vmem [shape: bf16[48,8], index: 1, kind: input, shape index: {}]
  %s2 = inlined_call_operand.vmem [shape: f32[1,8], index: 2, kind: input, shape index: {}]
  %s3 = inlined_call_operand.vmem [shape: bf16[512,8], index: 3, kind: output, shape index: {}]
  %s4 = sld [smem:[#allocation0]]
  $region45: #{discriminator_forward.3} parent=0
    _
  %s6 = ssub.s32 1, %s4
  %s7 = scalar_select 0, %s6, %s4
  loop: start=0, step=1, limit=4
  $region2: #{discriminator_forward.3} parent=0 // loop_pre_header
    _
  $region3: #{discriminator_forward.3} parent=0 // loop_header
    %s9 = sphi 0, %s13
    %p10 = scmp.ge.s32.totalorder %s9, 4
    %s19 = sphi 0, %s21
    %s22 = sphi 0, %s19
    %s23 = sphi 0, %s22
    %s39 = sphi 0, %s23
    %s43 = sphi 0, %s43
    %s45 = sphi 0, %s43
    %s46 = sphi 0, %s45
    %s60 = sphi 0, %s46
    %s64 = sphi 0, %s64
    %s66 = sphi 0, %s64
    %s67 = sphi 0, %s66
    %s81 = sphi 0, %s67
    %s87 = sphi 0, %s89
    %s90 = sphi 0, %s87
    %s91 = sphi 0, %s90
    %s107 = sphi 0, %s91
  $region4: #{discriminator_forward.3} parent=0 // loop_header_branch
    %12 = sbr.rel (%p10) target = $region8
  $region5: #{discriminator_forward.3} parent=0 // loop_body
    %s14 = ssub.s32 %s9, 1
    %s15 = ssub.s32 %s9, 2
    %s16 = sadd.s32 %s9, 1
    %s17 = ssub.s32 %s9, %s16
    %p18 = scmp.eq.s32.totalorder %s17, 0
    %s20 = sadd.s32 %s19, 1
    %s21 = scalar_select %p18, %s19, %s20
    %p24 = pneg %p18
    %p25 = scmp.eq.s32.totalorder %s9, 1
    %p26 = por %p24, %p25
    %p27 = scmp.ne.s32.totalorder %s19, %s22
    %p28 = scmp.eq.s32.totalorder %s9, 0
    %p29 = por %p27, %p28
    %p30 = scmp.ne.s32.totalorder %s19, %s22
    %p31 = scmp.eq.s32.totalorder %s14, 1
    %p32 = por %p30, %p31
    %p33 = scmp.ne.s32.totalorder %s22, %s23
    %p34 = scmp.eq.s32.totalorder %s14, 0
    %p35 = por %p33, %p34
    %p36 = scmp.ne.s32.totalorder %s22, %s23
    %p37 = scmp.eq.s32.totalorder %s15, 1
    %p38 = por %p36, %p37
    %p40 = scmp.ne.s32.totalorder %s23, %s39
    %p41 = scmp.eq.s32.totalorder %s15, 0
    %p42 = por %p40, %p41
    %s44 = sadd.s32 %s43, 1
    %p47 = scmp.eq.s32.totalorder %s9, 1
    %p48 = scmp.ne.s32.totalorder %s43, %s45
    %p49 = scmp.eq.s32.totalorder %s9, 0
    %p50 = por %p48, %p49
    %p51 = scmp.ne.s32.totalorder %s43, %s45
    %p52 = scmp.eq.s32.totalorder %s14, 1
    %p53 = por %p51, %p52
    %p54 = scmp.ne.s32.totalorder %s45, %s46
    %p55 = scmp.eq.s32.totalorder %s14, 0
    %p56 = por %p54, %p55
    %p57 = scmp.ne.s32.totalorder %s45, %s46
    %p58 = scmp.eq.s32.totalorder %s15, 1
    %p59 = por %p57, %p58
    %p61 = scmp.ne.s32.totalorder %s46, %s60
    %p62 = scmp.eq.s32.totalorder %s15, 0
    %p63 = por %p61, %p62
    %s65 = sadd.s32 %s64, 1
    %p68 = scmp.eq.s32.totalorder %s9, 1
    %p69 = scmp.ne.s32.totalorder %s64, %s66
    %p70 = scmp.eq.s32.totalorder %s9, 0
    %p71 = por %p69, %p70
    %p72 = scmp.ne.s32.totalorder %s64, %s66
    %p73 = scmp.eq.s32.totalorder %s14, 1
    %p74 = por %p72, %p73
    %p75 = scmp.ne.s32.totalorder %s66, %s67
    %p76 = scmp.eq.s32.totalorder %s14, 0
    %p77 = por %p75, %p76
    %p78 = scmp.ne.s32.totalorder %s66, %s67
    %p79 = scmp.eq.s32.totalorder %s15, 1
    %p80 = por %p78, %p79
    %p82 = scmp.ne.s32.totalorder %s67, %s81
    %p83 = scmp.eq.s32.totalorder %s15, 0
    %p84 = por %p82, %p83
    %s85 = ssub.s32 %s9, %s16
    %p86 = scmp.eq.s32.totalorder %s85, 0
    %s88 = sadd.s32 %s87, 1
    %s89 = scalar_select %p86, %s87, %s88
    %p92 = pneg %p86
    %p93 = scmp.eq.s32.totalorder %s9, 1
    %p94 = por %p92, %p93
    %p95 = scmp.ne.s32.totalorder %s87, %s90
    %p96 = scmp.eq.s32.totalorder %s9, 0
    %p97 = por %p95, %p96
    %p98 = scmp.ne.s32.totalorder %s87, %s90
    %p99 = scmp.eq.s32.totalorder %s14, 1
    %p100 = por %p98, %p99
    %p101 = scmp.ne.s32.totalorder %s90, %s91
    %p102 = scmp.eq.s32.totalorder %s14, 0
    %p103 = por %p101, %p102
    %p104 = scmp.ne.s32.totalorder %s90, %s91
    %p105 = scmp.eq.s32.totalorder %s15, 1
    %p106 = por %p104, %p105
    %p108 = scmp.ne.s32.totalorder %s91, %s107
    %p109 = scmp.eq.s32.totalorder %s15, 0
    %p110 = por %p108, %p109
    %p111 = scmp.le.s32.totalorder 1, %s9
    %p112 = scmp.lt.s32.totalorder %s9, 3
    %p113 = pnand %p111, %p112
    %p114 = pneg %p113
    // Predicated region
    $region9: #{discriminator_forward.3} parent=5 // pred_check
      _
    $region10: #{discriminator_forward.3} parent=5 // pred_check_branch
      %116 = sbr.rel (%p113) target = $region12
    $region11: #{discriminator_forward.3} parent=5 // pred_region
      %s117 = ssub.s32 %s9, 1
      // Predicated region
      $region13: #{discriminator_forward.3} parent=11 // pred_check
        %p118 = pneg %p56
      $region14: #{discriminator_forward.3} parent=11 // pred_check_branch
        %120 = sbr.rel (%p118) target = $region16
      $region15: #{discriminator_forward.3} parent=11 // pred_region
        _
      $region16: #{discriminator_forward.3} parent=11 // pred_fallthru
        _
      // Predicated region
      $region17: #{discriminator_forward.3} parent=11 // pred_check
        %p121 = pneg %p77
      $region18: #{discriminator_forward.3} parent=11 // pred_check_branch
        %123 = sbr.rel (%p121) target = $region20
      $region19: #{discriminator_forward.3} parent=11 // pred_region
        _
      $region20: #{discriminator_forward.3} parent=11 // pred_fallthru
        _
    $region12: #{discriminator_forward.3} parent=5 // pred_fallthru
      _
    %p124 = scmp.lt.s32.totalorder %s9, 2
    // Predicated region
    $region21: #{discriminator_forward.3} parent=5 // pred_check
      %p125 = pneg %p124
    $region22: #{discriminator_forward.3} parent=5 // pred_check_branch
      %127 = sbr.rel (%p125) target = $region24
    $region23: #{discriminator_forward.3} parent=5 // pred_region
      // Predicated region
      $region25: #{discriminator_forward.3} parent=23 // pred_check
        %p128 = pneg %p29
      $region26: #{discriminator_forward.3} parent=23 // pred_check_branch
        %130 = sbr.rel (%p128) target = $region28
      $region27: #{discriminator_forward.3} parent=23 // pred_region
        %s131 = smul.u32 32, %s9
        %p132 = scmp.lt.s32.totalorder %s131, 63
        %s133 = scalar_select %p132, %s131, 63
        %s134 = smul.addr %s133, 4
        %s135 = scalar_lea.vmem %s0, %s134
        %s136 = smul.u32 32, %s9
      $region28: #{discriminator_forward.3} parent=23 // pred_fallthru
        _
    $region24: #{discriminator_forward.3} parent=5 // pred_fallthru
      _
    %p137 = scmp.le.s32.totalorder 1, %s9
    %p138 = scmp.lt.s32.totalorder %s9, 3
    %p139 = pnand %p137, %p138
    %p140 = pneg %p139
    // Predicated region
    $region29: #{discriminator_forward.3} parent=5 // pred_check
      _
    $region30: #{discriminator_forward.3} parent=5 // pred_check_branch
      %142 = sbr.rel (%p139) target = $region32
    $region31: #{discriminator_forward.3} parent=5 // pred_region
      %s143 = ssub.s32 %s9, 1
      %s144 = smul.u32 32, %s14
      %p145 = scmp.lt.s32.totalorder %s144, 63
      %s146 = scalar_select %p145, %s144, 63
      %s147 = smul.addr %s146, 4
      %s148 = scalar_lea.vmem %s0, %s147
      %p149 = pneg %p35
      %p150 = pneg %p32
      %p151 = pneg %p56
      %p152 = pneg %p53
      %p153 = pneg %p77
      %p154 = pneg %p74
      %p155 = pneg %p103
      %p156 = pneg %p100
      %s157 = smul.u32 32, %s14
      %p158 = scmp.lt.s32.totalorder %s157, 63
      %s159 = scalar_select %p158, %s157, 63
      %s160 = smul.addr %s159, 4
      %s161 = scalar_lea.vmem %s3, %s160
      %s162 = smul.u32 32, %s14
      %p163 = scmp.lt.s32.totalorder %s162, 63
      %s164 = scalar_select %p163, %s162, 63
      %s165 = smul.addr %s164, 4
      %s166 = scalar_lea.vmem %s0, %s165
      %s167 = smul.u32 32, %s14
      %s168 = smul.u32 32, %s14
      %p169 = scmp.lt.s32.totalorder %s168, 63
      %s170 = scalar_select %p169, %s168, 63
      %s171 = smul.addr %s170, 4
      %s172 = scalar_lea.vmem %s3, %s171
      %s173 = smul.u32 32, %s14
      %v175 = vld [vmem:[%s166] sm:$0xf]
      %v176 = vld [vmem:[%s166 + $0x4] sm:$0xf]
      %v177 = vld [vmem:[%s166 + $0x8] sm:$0xf]
      %v178 = vld [vmem:[%s166 + $0xc] sm:$0xf]
      %v179 = vld [vmem:[%s166 + $0x10] sm:$0xf]
      %v180 = vld [vmem:[%s166 + $0x14] sm:$0xf]
      %v181 = vld [vmem:[%s166 + $0x18] sm:$0xf]
      %v182 = vld [vmem:[%s166 + $0x1c] sm:$0xf]
      %v183 = vld [vmem:[%s166 + $0x20] sm:$0xf]
      %v184 = vld [vmem:[%s166 + $0x24] sm:$0xf]
      %v185 = vld [vmem:[%s166 + $0x28] sm:$0xf]
      %v186 = vld [vmem:[%s166 + $0x2c] sm:$0xf]
      %v187 = vld [vmem:[%s166 + $0x30] sm:$0xf]
      %v188 = vld [vmem:[%s166 + $0x34] sm:$0xf]
      %v189 = vld [vmem:[%s166 + $0x38] sm:$0xf]
      %v190 = vld [vmem:[%s166 + $0x3c] sm:$0xf]
      %v191 = vld [vmem:[%s166 + $0x40] sm:$0xf]
      %v192 = vld [vmem:[%s166 + $0x44] sm:$0xf]
      %v193 = vld [vmem:[%s166 + $0x48] sm:$0xf]
      %v194 = vld [vmem:[%s166 + $0x4c] sm:$0xf]
      %v195 = vld [vmem:[%s166 + $0x50] sm:$0xf]
      %v196 = vld [vmem:[%s166 + $0x54] sm:$0xf]
      %v197 = vld [vmem:[%s166 + $0x58] sm:$0xf]
      %v198 = vld [vmem:[%s166 + $0x5c] sm:$0xf]
      %v199 = vld [vmem:[%s166 + $0x60] sm:$0xf]
      %v200 = vld [vmem:[%s166 + $0x64] sm:$0xf]
      %v201 = vld [vmem:[%s166 + $0x68] sm:$0xf]
      %v202 = vld [vmem:[%s166 + $0x6c] sm:$0xf]
      %v203 = vld [vmem:[%s166 + $0x70] sm:$0xf]
      %v204 = vld [vmem:[%s166 + $0x74] sm:$0xf]
      %v205 = vld [vmem:[%s166 + $0x78] sm:$0xf]
      %v206 = vld [vmem:[%s166 + $0x7c] sm:$0xf]
      %v207 = vld [vmem:[%s1] sm:$0xf]
      %v208 = vld [vmem:[%s1 + $0x4] sm:$0xf]
      %v209 = vld [vmem:[%s1 + $0x8] sm:$0xf]
      %v210 = vld [vmem:[%s1 + $0xc] sm:$0xf]
      %v211 = vld [vmem:[%s1 + $0x10] sm:$0xf]
      %v212 = vld [vmem:[%s1 + $0x14] sm:$0xf]
      %v213 = vld [vmem:[%s2] sm:$0x1]
      %v215 = vlaneseq
      %v216 = vshrl.u32 %v215, 7
      %v217 = vsub.s32 0, %v216
      %v218 = vrot.slane %v213, %v217
      %v252 = vunpack.c.l.b16 %v175
      %v253 = vunpack.c.l.b16 %v176
      %v254 = vunpack.c.l.b16 %v177
      %v255 = vunpack.c.l.b16 %v178
      %v256 = vunpack.c.l.b16 %v179
      %v257 = vunpack.c.l.b16 %v180
      %v258 = vunpack.c.l.b16 %v181
      %v259 = vunpack.c.l.b16 %v182
      %v260 = vunpack.c.l.b16 %v183
      %v261 = vunpack.c.l.b16 %v184
      %v262 = vunpack.c.l.b16 %v185
      %v263 = vunpack.c.l.b16 %v186
      %v264 = vunpack.c.l.b16 %v187
      %v265 = vunpack.c.l.b16 %v188
      %v266 = vunpack.c.l.b16 %v189
      %v267 = vunpack.c.l.b16 %v190
      %v268 = vunpack.c.l.b16 %v191
      %v269 = vunpack.c.l.b16 %v192
      %v270 = vunpack.c.l.b16 %v193
      %v271 = vunpack.c.l.b16 %v194
      %v272 = vunpack.c.l.b16 %v195
      %v273 = vunpack.c.l.b16 %v196
      %v274 = vunpack.c.l.b16 %v197
      %v275 = vunpack.c.l.b16 %v198
      %v276 = vunpack.c.l.b16 %v199
      %v277 = vunpack.c.l.b16 %v200
      %v278 = vunpack.c.l.b16 %v201
      %v279 = vunpack.c.l.b16 %v202
      %v280 = vunpack.c.l.b16 %v203
      %v281 = vunpack.c.l.b16 %v204
      %v282 = vunpack.c.l.b16 %v205
      %v283 = vunpack.c.l.b16 %v206
      %v284 = vpack.c.b16 %v253, %v252
      %v285 = vpack.c.b16 %v255, %v254
      %v286 = vpack.c.b16 %v257, %v256
      %v287 = vpack.c.b16 %v259, %v258
      %v288 = vpack.c.b16 %v261, %v260
      %v289 = vpack.c.b16 %v263, %v262
      %v290 = vpack.c.b16 %v265, %v264
      %v291 = vpack.c.b16 %v267, %v266
      %v292 = vpack.c.b16 %v269, %v268
      %v293 = vpack.c.b16 %v271, %v270
      %v294 = vpack.c.b16 %v273, %v272
      %v295 = vpack.c.b16 %v275, %v274
      %v296 = vpack.c.b16 %v277, %v276
      %v297 = vpack.c.b16 %v279, %v278
      %v298 = vpack.c.b16 %v281, %v280
      %v299 = vpack.c.b16 %v283, %v282
      %v306 = vunpack.c.l.b16 %v207
      %v307 = vunpack.c.l.b16 %v208
      %v308 = vunpack.c.l.b16 %v209
      %v309 = vunpack.c.l.b16 %v210
      %v310 = vunpack.c.l.b16 %v211
      %v311 = vunpack.c.l.b16 %v212
      %v312 = vpack.c.b16 %v307, %v306
      %v313 = vpack.c.b16 %v309, %v308
      %v314 = vpack.c.b16 %v311, %v310
      %vm318 = vcmask 392192
      %v320 = vsel %vm318, %v284, 0
      %v323 = vsel %vm318, %v285, 0
      %v326 = vsel %vm318, %v286, 0
      %v329 = vsel %vm318, %v287, 0
      %v332 = vsel %vm318, %v288, 0
      %v335 = vsel %vm318, %v289, 0
      %v338 = vsel %vm318, %v290, 0
      %v341 = vsel %vm318, %v291, 0
      %v344 = vsel %vm318, %v292, 0
      %v347 = vsel %vm318, %v293, 0
      %v350 = vsel %vm318, %v294, 0
      %v353 = vsel %vm318, %v295, 0
      %v356 = vsel %vm318, %v296, 0
      %v359 = vsel %vm318, %v297, 0
      %v362 = vsel %vm318, %v298, 0
      %v365 = vsel %vm318, %v299, 0
      %367 = vmatprep.subr.bf16.mxu0 0
      %368 = vmatpush1.bf16.msra.mxu0 %v312
      %369 = vmatprep.subr.bf16.mxu0 0
      %370 = vmatpush1.bf16.msra.mxu0 %v313
      %371 = vmatprep.subr.bf16.mxu0 0
      %372 = vmatpush1.bf16.msra.mxu0 %v314
      %373 = vmatprep.subr.bf16.mxu0 0
      %374 = vmatpush1.bf16.msra.mxu0 0
      %375 = vmatprep.subr.bf16.mxu0 0
      %376 = vmatpush1.bf16.msra.mxu0 0
      %377 = vmatprep.subr.bf16.mxu0 0
      %378 = vmatpush1.bf16.msra.mxu0 0
      %379 = vmatprep.subr.bf16.mxu0 0
      %380 = vmatpush1.bf16.msra.mxu0 0
      %381 = vmatprep.subr.bf16.mxu0 0
      %382 = vmatpush1.bf16.msra.mxu0 0
      %383 = vmatprep.subr.bf16.mxu0 0
      %384 = vmatpush1.bf16.msra.mxu0 0
      %385 = vmatprep.subr.bf16.mxu0 0
      %386 = vmatpush1.bf16.msra.mxu0 0
      %387 = vmatprep.subr.bf16.mxu0 0
      %388 = vmatpush1.bf16.msra.mxu0 0
      %389 = vmatprep.subr.bf16.mxu0 0
      %390 = vmatpush1.bf16.msra.mxu0 0
      %391 = vmatprep.subr.bf16.mxu0 0
      %392 = vmatpush1.bf16.msra.mxu0 0
      %393 = vmatprep.subr.bf16.mxu0 0
      %394 = vmatpush1.bf16.msra.mxu0 0
      %395 = vmatprep.subr.bf16.mxu0 0
      %396 = vmatpush1.bf16.msra.mxu0 0
      %397 = vmatprep.subr.bf16.mxu0 0
      %398 = vmatpush1.bf16.msra.mxu0 0
      %399 = vmatprep.mubr.bf16.mxu0 0
      %400 = vmatmul.mubr.bf16.gmra.mrb[0].mxu0 %v320
      %v401 = vpop.f32.mrb[0].mxu0
      %v402 = vadd.f32 %v218, %v401
      %v403 = vpop.f32.mrb[0].mxu0
      %v404 = vpop.f32.mrb[0].mxu0
      %v405 = vadd.f32 %v218, %v404
      %v406 = vpop.f32.mrb[0].mxu0
      %407 = vmatprep.mubr.bf16.mxu0 0
      %408 = vmatmul.mubr.bf16.gmra.mrb[0].mxu0 %v323
      %v409 = vpop.f32.mrb[0].mxu0
      %v410 = vadd.f32 %v218, %v409
      %v411 = vpop.f32.mrb[0].mxu0
      %v412 = vpop.f32.mrb[0].mxu0
      %v413 = vadd.f32 %v218, %v412
      %v414 = vpop.f32.mrb[0].mxu0
      %415 = vmatprep.mubr.bf16.mxu0 0
      %416 = vmatmul.mubr.bf16.gmra.mrb[0].mxu0 %v326
      %v417 = vpop.f32.mrb[0].mxu0
      %v418 = vadd.f32 %v218, %v417
      %v419 = vpop.f32.mrb[0].mxu0
      %v420 = vpop.f32.mrb[0].mxu0
      %v421 = vadd.f32 %v218, %v420
      %v422 = vpop.f32.mrb[0].mxu0
      %423 = vmatprep.mubr.bf16.mxu0 0
      %424 = vmatmul.mubr.bf16.gmra.mrb[0].mxu0 %v329
      %v425 = vpop.f32.mrb[0].mxu0
      %v426 = vadd.f32 %v218, %v425
      %v427 = vpop.f32.mrb[0].mxu0
      %v428 = vpop.f32.mrb[0].mxu0
      %v429 = vadd.f32 %v218, %v428
      %v430 = vpop.f32.mrb[0].mxu0
      %431 = vmatprep.mubr.bf16.mxu0 0
      %432 = vmatmul.mubr.bf16.gmra.mrb[0].mxu0 %v332
      %v433 = vpop.f32.mrb[0].mxu0
      %v434 = vadd.f32 %v218, %v433
      %v435 = vpop.f32.mrb[0].mxu0
      %v436 = vpop.f32.mrb[0].mxu0
      %v437 = vadd.f32 %v218, %v436
      %v438 = vpop.f32.mrb[0].mxu0
      %439 = vmatprep.mubr.bf16.mxu0 0
      %440 = vmatmul.mubr.bf16.gmra.mrb[0].mxu0 %v335
      %v441 = vpop.f32.mrb[0].mxu0
      %v442 = vadd.f32 %v218, %v441
      %v443 = vpop.f32.mrb[0].mxu0
      %v444 = vpop.f32.mrb[0].mxu0
      %v445 = vadd.f32 %v218, %v444
      %v446 = vpop.f32.mrb[0].mxu0
      %447 = vmatprep.mubr.bf16.mxu0 0
      %448 = vmatmul.mubr.bf16.gmra.mrb[0].mxu0 %v338
      %v449 = vpop.f32.mrb[0].mxu0
      %v450 = vadd.f32 %v218, %v449
      %v451 = vpop.f32.mrb[0].mxu0
      %v452 = vpop.f32.mrb[0].mxu0
      %v453 = vadd.f32 %v218, %v452
      %v454 = vpop.f32.mrb[0].mxu0
      %455 = vmatprep.mubr.bf16.mxu0 0
      %456 = vmatmul.mubr.bf16.gmra.mrb[0].mxu0 %v341
      %v457 = vpop.f32.mrb[0].mxu0
      %v458 = vadd.f32 %v218, %v457
      %v459 = vpop.f32.mrb[0].mxu0
      %v460 = vpop.f32.mrb[0].mxu0
      %v461 = vadd.f32 %v218, %v460
      %v462 = vpop.f32.mrb[0].mxu0
      %463 = vmatprep.mubr.bf16.mxu0 0
      %464 = vmatmul.mubr.bf16.gmra.mrb[0].mxu0 %v344
      %v465 = vpop.f32.mrb[0].mxu0
      %v466 = vadd.f32 %v218, %v465
      %v467 = vpop.f32.mrb[0].mxu0
      %v468 = vpop.f32.mrb[0].mxu0
      %v469 = vadd.f32 %v218, %v468
      %v470 = vpop.f32.mrb[0].mxu0
      %471 = vmatprep.mubr.bf16.mxu0 0
      %472 = vmatmul.mubr.bf16.gmra.mrb[0].mxu0 %v347
      %v473 = vpop.f32.mrb[0].mxu0
      %v474 = vadd.f32 %v218, %v473
      %v475 = vpop.f32.mrb[0].mxu0
      %v476 = vpop.f32.mrb[0].mxu0
      %v477 = vadd.f32 %v218, %v476
      %v478 = vpop.f32.mrb[0].mxu0
      %479 = vmatprep.mubr.bf16.mxu0 0
      %480 = vmatmul.mubr.bf16.gmra.mrb[0].mxu0 %v350
      %v481 = vpop.f32.mrb[0].mxu0
      %v482 = vadd.f32 %v218, %v481
      %v483 = vpop.f32.mrb[0].mxu0
      %v484 = vpop.f32.mrb[0].mxu0
      %v485 = vadd.f32 %v218, %v484
      %v486 = vpop.f32.mrb[0].mxu0
      %487 = vmatprep.mubr.bf16.mxu0 0
      %488 = vmatmul.mubr.bf16.gmra.mrb[0].mxu0 %v353
      %v489 = vpop.f32.mrb[0].mxu0
      %v490 = vadd.f32 %v218, %v489
      %v491 = vpop.f32.mrb[0].mxu0
      %v492 = vpop.f32.mrb[0].mxu0
      %v493 = vadd.f32 %v218, %v492
      %v494 = vpop.f32.mrb[0].mxu0
      %495 = vmatprep.mubr.bf16.mxu0 0
      %496 = vmatmul.mubr.bf16.gmra.mrb[0].mxu0 %v356
      %v497 = vpop.f32.mrb[0].mxu0
      %v498 = vadd.f32 %v218, %v497
      %v499 = vpop.f32.mrb[0].mxu0
      %v500 = vpop.f32.mrb[0].mxu0
      %v501 = vadd.f32 %v218, %v500
      %v502 = vpop.f32.mrb[0].mxu0
      %503 = vmatprep.mubr.bf16.mxu0 0
      %504 = vmatmul.mubr.bf16.gmra.mrb[0].mxu0 %v359
      %v505 = vpop.f32.mrb[0].mxu0
      %v506 = vadd.f32 %v218, %v505
      %v507 = vpop.f32.mrb[0].mxu0
      %v508 = vpop.f32.mrb[0].mxu0
      %v509 = vadd.f32 %v218, %v508
      %v510 = vpop.f32.mrb[0].mxu0
      %511 = vmatprep.mubr.bf16.mxu0 0
      %512 = vmatmul.mubr.bf16.gmra.mrb[0].mxu0 %v362
      %v513 = vpop.f32.mrb[0].mxu0
      %v514 = vadd.f32 %v218, %v513
      %v515 = vpop.f32.mrb[0].mxu0
      %v516 = vpop.f32.mrb[0].mxu0
      %v517 = vadd.f32 %v218, %v516
      %v518 = vpop.f32.mrb[0].mxu0
      %519 = vmatprep.mubr.bf16.mxu0 0
      %520 = vmatmul.mubr.bf16.gmra.mrb[0].mxu0 %v365
      %v521 = vpop.f32.mrb[0].mxu0
      %v522 = vadd.f32 %v218, %v521
      %v523 = vpop.f32.mrb[0].mxu0
      %v524 = vpop.f32.mrb[0].mxu0
      %v525 = vadd.f32 %v218, %v524
      %v526 = vpop.f32.mrb[0].mxu0
      %527 = vdwg.mxu0
      %vm528 = vcmp.ge.f32.partialorder %v402, 0.0
      %vm529 = vcmp.ge.f32.partialorder %v405, 0.0
      %vm530 = vcmp.ge.f32.partialorder %v410, 0.0
      %vm531 = vcmp.ge.f32.partialorder %v413, 0.0
      %vm532 = vcmp.ge.f32.partialorder %v418, 0.0
      %vm533 = vcmp.ge.f32.partialorder %v421, 0.0
      %vm534 = vcmp.ge.f32.partialorder %v426, 0.0
      %vm535 = vcmp.ge.f32.partialorder %v429, 0.0
      %vm536 = vcmp.ge.f32.partialorder %v434, 0.0
      %vm537 = vcmp.ge.f32.partialorder %v437, 0.0
      %vm538 = vcmp.ge.f32.partialorder %v442, 0.0
      %vm539 = vcmp.ge.f32.partialorder %v445, 0.0
      %vm540 = vcmp.ge.f32.partialorder %v450, 0.0
      %vm541 = vcmp.ge.f32.partialorder %v453, 0.0
      %vm542 = vcmp.ge.f32.partialorder %v458, 0.0
      %vm543 = vcmp.ge.f32.partialorder %v461, 0.0
      %vm544 = vcmp.ge.f32.partialorder %v466, 0.0
      %vm545 = vcmp.ge.f32.partialorder %v469, 0.0
      %vm546 = vcmp.ge.f32.partialorder %v474, 0.0
      %vm547 = vcmp.ge.f32.partialorder %v477, 0.0
      %vm548 = vcmp.ge.f32.partialorder %v482, 0.0
      %vm549 = vcmp.ge.f32.partialorder %v485, 0.0
      %vm550 = vcmp.ge.f32.partialorder %v490, 0.0
      %vm551 = vcmp.ge.f32.partialorder %v493, 0.0
      %vm552 = vcmp.ge.f32.partialorder %v498, 0.0
      %vm553 = vcmp.ge.f32.partialorder %v501, 0.0
      %vm554 = vcmp.ge.f32.partialorder %v506, 0.0
      %vm555 = vcmp.ge.f32.partialorder %v509, 0.0
      %vm556 = vcmp.ge.f32.partialorder %v514, 0.0
      %vm557 = vcmp.ge.f32.partialorder %v517, 0.0
      %vm558 = vcmp.ge.f32.partialorder %v522, 0.0
      %vm559 = vcmp.ge.f32.partialorder %v525, 0.0
      %v560 = vmul.f32 %v402, 0.2
      %v561 = vmul.f32 %v405, 0.2
      %v562 = vmul.f32 %v410, 0.2
      %v563 = vmul.f32 %v413, 0.2
      %v564 = vmul.f32 %v418, 0.2
      %v565 = vmul.f32 %v421, 0.2
      %v566 = vmul.f32 %v426, 0.2
      %v567 = vmul.f32 %v429, 0.2
      %v568 = vmul.f32 %v434, 0.2
      %v569 = vmul.f32 %v437, 0.2
      %v570 = vmul.f32 %v442, 0.2
      %v571 = vmul.f32 %v445, 0.2
      %v572 = vmul.f32 %v450, 0.2
      %v573 = vmul.f32 %v453, 0.2
      %v574 = vmul.f32 %v458, 0.2
      %v575 = vmul.f32 %v461, 0.2
      %v576 = vmul.f32 %v466, 0.2
      %v577 = vmul.f32 %v469, 0.2
      %v578 = vmul.f32 %v474, 0.2
      %v579 = vmul.f32 %v477, 0.2
      %v580 = vmul.f32 %v482, 0.2
      %v581 = vmul.f32 %v485, 0.2
      %v582 = vmul.f32 %v490, 0.2
      %v583 = vmul.f32 %v493, 0.2
      %v584 = vmul.f32 %v498, 0.2
      %v585 = vmul.f32 %v501, 0.2
      %v586 = vmul.f32 %v506, 0.2
      %v587 = vmul.f32 %v509, 0.2
      %v588 = vmul.f32 %v514, 0.2
      %v589 = vmul.f32 %v517, 0.2
      %v590 = vmul.f32 %v522, 0.2
      %v591 = vmul.f32 %v525, 0.2
      %v592 = vsel %vm528, %v402, %v560
      %v593 = vsel %vm529, %v405, %v561
      %v594 = vsel %vm530, %v410, %v562
      %v595 = vsel %vm531, %v413, %v563
      %v596 = vsel %vm532, %v418, %v564
      %v597 = vsel %vm533, %v421, %v565
      %v598 = vsel %vm534, %v426, %v566
      %v599 = vsel %vm535, %v429, %v567
      %v600 = vsel %vm536, %v434, %v568
      %v601 = vsel %vm537, %v437, %v569
      %v602 = vsel %vm538, %v442, %v570
      %v603 = vsel %vm539, %v445, %v571
      %v604 = vsel %vm540, %v450, %v572
      %v605 = vsel %vm541, %v453, %v573
      %v606 = vsel %vm542, %v458, %v574
      %v607 = vsel %vm543, %v461, %v575
      %v608 = vsel %vm544, %v466, %v576
      %v609 = vsel %vm545, %v469, %v577
      %v610 = vsel %vm546, %v474, %v578
      %v611 = vsel %vm547, %v477, %v579
      %v612 = vsel %vm548, %v482, %v580
      %v613 = vsel %vm549, %v485, %v581
      %v614 = vsel %vm550, %v490, %v582
      %v615 = vsel %vm551, %v493, %v583
      %v616 = vsel %vm552, %v498, %v584
      %v617 = vsel %vm553, %v501, %v585
      %v618 = vsel %vm554, %v506, %v586
      %v619 = vsel %vm555, %v509, %v587
      %v620 = vsel %vm556, %v514, %v588
      %v621 = vsel %vm557, %v517, %v589
      %v622 = vsel %vm558, %v522, %v590
      %v623 = vsel %vm559, %v525, %v591
      %v624 = vpack.c.bf16 %v593, %v592
      %v625 = vpack.c.bf16 %v595, %v594
      %v626 = vpack.c.bf16 %v597, %v596
      %v627 = vpack.c.bf16 %v599, %v598
      %v628 = vpack.c.bf16 %v601, %v600
      %v629 = vpack.c.bf16 %v603, %v602
      %v630 = vpack.c.bf16 %v605, %v604
      %v631 = vpack.c.bf16 %v607, %v606
      %v632 = vpack.c.bf16 %v609, %v608
      %v633 = vpack.c.bf16 %v611, %v610
      %v634 = vpack.c.bf16 %v613, %v612
      %v635 = vpack.c.bf16 %v615, %v614
      %v636 = vpack.c.bf16 %v617, %v616
      %v637 = vpack.c.bf16 %v619, %v618
      %v638 = vpack.c.bf16 %v621, %v620
      %v639 = vpack.c.bf16 %v623, %v622
      %v656 = vunpack.c.l.b16 %v624
      %v657 = vunpack.c.h.b16 %v624
      %v658 = vunpack.c.l.b16 %v625
      %v659 = vunpack.c.h.b16 %v625
      %v660 = vunpack.c.l.b16 %v626
      %v661 = vunpack.c.h.b16 %v626
      %v662 = vunpack.c.l.b16 %v627
      %v663 = vunpack.c.h.b16 %v627
      %v664 = vunpack.c.l.b16 %v628
      %v665 = vunpack.c.h.b16 %v628
      %v666 = vunpack.c.l.b16 %v629
      %v667 = vunpack.c.h.b16 %v629
      %v668 = vunpack.c.l.b16 %v630
      %v669 = vunpack.c.h.b16 %v630
      %v670 = vunpack.c.l.b16 %v631
      %v671 = vunpack.c.h.b16 %v631
      %v672 = vunpack.c.l.b16 %v632
      %v673 = vunpack.c.h.b16 %v632
      %v674 = vunpack.c.l.b16 %v633
      %v675 = vunpack.c.h.b16 %v633
      %v676 = vunpack.c.l.b16 %v634
      %v677 = vunpack.c.h.b16 %v634
      %v678 = vunpack.c.l.b16 %v635
      %v679 = vunpack.c.h.b16 %v635
      %v680 = vunpack.c.l.b16 %v636
      %v681 = vunpack.c.h.b16 %v636
      %v682 = vunpack.c.l.b16 %v637
      %v683 = vunpack.c.h.b16 %v637
      %v684 = vunpack.c.l.b16 %v638
      %v685 = vunpack.c.h.b16 %v638
      %v686 = vunpack.c.l.b16 %v639
      %v687 = vunpack.c.h.b16 %v639
      %v688 = vpack.c.b16 %v656, %v656
      %v689 = vpack.c.b16 %v657, %v657
      %v690 = vpack.c.b16 %v658, %v658
      %v691 = vpack.c.b16 %v659, %v659
      %v692 = vpack.c.b16 %v660, %v660
      %v693 = vpack.c.b16 %v661, %v661
      %v694 = vpack.c.b16 %v662, %v662
      %v695 = vpack.c.b16 %v663, %v663
      %v696 = vpack.c.b16 %v664, %v664
      %v697 = vpack.c.b16 %v665, %v665
      %v698 = vpack.c.b16 %v666, %v666
      %v699 = vpack.c.b16 %v667, %v667
      %v700 = vpack.c.b16 %v668, %v668
      %v701 = vpack.c.b16 %v669, %v669
      %v702 = vpack.c.b16 %v670, %v670
      %v703 = vpack.c.b16 %v671, %v671
      %v704 = vpack.c.b16 %v672, %v672
      %v705 = vpack.c.b16 %v673, %v673
      %v706 = vpack.c.b16 %v674, %v674
      %v707 = vpack.c.b16 %v675, %v675
      %v708 = vpack.c.b16 %v676, %v676
      %v709 = vpack.c.b16 %v677, %v677
      %v710 = vpack.c.b16 %v678, %v678
      %v711 = vpack.c.b16 %v679, %v679
      %v712 = vpack.c.b16 %v680, %v680
      %v713 = vpack.c.b16 %v681, %v681
      %v714 = vpack.c.b16 %v682, %v682
      %v715 = vpack.c.b16 %v683, %v683
      %v716 = vpack.c.b16 %v684, %v684
      %v717 = vpack.c.b16 %v685, %v685
      %v718 = vpack.c.b16 %v686, %v686
      %v719 = vpack.c.b16 %v687, %v687
      %vm752 = vcmask 60416
      %753 = vst.msk [vmem:[%s172] sm:$0xf] %vm752, %v688
      %754 = vst.msk [vmem:[%s172 + $0x4] sm:$0xf] %vm752, %v689
      %755 = vst.msk [vmem:[%s172 + $0x8] sm:$0xf] %vm752, %v690
      %756 = vst.msk [vmem:[%s172 + $0xc] sm:$0xf] %vm752, %v691
      %757 = vst.msk [vmem:[%s172 + $0x10] sm:$0xf] %vm752, %v692
      %758 = vst.msk [vmem:[%s172 + $0x14] sm:$0xf] %vm752, %v693
      %759 = vst.msk [vmem:[%s172 + $0x18] sm:$0xf] %vm752, %v694
      %760 = vst.msk [vmem:[%s172 + $0x1c] sm:$0xf] %vm752, %v695
      %761 = vst.msk [vmem:[%s172 + $0x20] sm:$0xf] %vm752, %v696
      %762 = vst.msk [vmem:[%s172 + $0x24] sm:$0xf] %vm752, %v697
      %763 = vst.msk [vmem:[%s172 + $0x28] sm:$0xf] %vm752, %v698
      %764 = vst.msk [vmem:[%s172 + $0x2c] sm:$0xf] %vm752, %v699
      %765 = vst.msk [vmem:[%s172 + $0x30] sm:$0xf] %vm752, %v700
      %766 = vst.msk [vmem:[%s172 + $0x34] sm:$0xf] %vm752, %v701
      %767 = vst.msk [vmem:[%s172 + $0x38] sm:$0xf] %vm752, %v702
      %768 = vst.msk [vmem:[%s172 + $0x3c] sm:$0xf] %vm752, %v703
      %769 = vst.msk [vmem:[%s172 + $0x40] sm:$0xf] %vm752, %v704
      %770 = vst.msk [vmem:[%s172 + $0x44] sm:$0xf] %vm752, %v705
      %771 = vst.msk [vmem:[%s172 + $0x48] sm:$0xf] %vm752, %v706
      %772 = vst.msk [vmem:[%s172 + $0x4c] sm:$0xf] %vm752, %v707
      %773 = vst.msk [vmem:[%s172 + $0x50] sm:$0xf] %vm752, %v708
      %774 = vst.msk [vmem:[%s172 + $0x54] sm:$0xf] %vm752, %v709
      %775 = vst.msk [vmem:[%s172 + $0x58] sm:$0xf] %vm752, %v710
      %776 = vst.msk [vmem:[%s172 + $0x5c] sm:$0xf] %vm752, %v711
      %777 = vst.msk [vmem:[%s172 + $0x60] sm:$0xf] %vm752, %v712
      %778 = vst.msk [vmem:[%s172 + $0x64] sm:$0xf] %vm752, %v713
      %779 = vst.msk [vmem:[%s172 + $0x68] sm:$0xf] %vm752, %v714
      %780 = vst.msk [vmem:[%s172 + $0x6c] sm:$0xf] %vm752, %v715
      %781 = vst.msk [vmem:[%s172 + $0x70] sm:$0xf] %vm752, %v716
      %782 = vst.msk [vmem:[%s172 + $0x74] sm:$0xf] %vm752, %v717
      %783 = vst.msk [vmem:[%s172 + $0x78] sm:$0xf] %vm752, %v718
      %784 = vst.msk [vmem:[%s172 + $0x7c] sm:$0xf] %vm752, %v719
      %s785 = smul.u32 32, %s14
      %p786 = scmp.lt.s32.totalorder %s785, 63
      %s787 = scalar_select %p786, %s785, 63
      %s788 = smul.addr %s787, 4
      %s789 = scalar_lea.vmem %s3, %s788
      // Predicated region
      $region33: #{discriminator_forward.3} parent=31 // pred_check
        %p790 = pneg %p100
      $region34: #{discriminator_forward.3} parent=31 // pred_check_branch
        %792 = sbr.rel (%p790) target = $region36
      $region35: #{discriminator_forward.3} parent=31 // pred_region
        %s793 = smul.u32 32, %s14
      $region36: #{discriminator_forward.3} parent=31 // pred_fallthru
        _
    $region32: #{discriminator_forward.3} parent=5 // pred_fallthru
      _
    %p794 = scmp.le.s32.totalorder 2, %s9
    // Predicated region
    $region37: #{discriminator_forward.3} parent=5 // pred_check
      %p795 = pneg %p794
    $region38: #{discriminator_forward.3} parent=5 // pred_check_branch
      %797 = sbr.rel (%p795) target = $region40
    $region39: #{discriminator_forward.3} parent=5 // pred_region
      %s798 = ssub.s32 %s9, 2
      // Predicated region
      $region41: #{discriminator_forward.3} parent=39 // pred_check
        %p799 = pneg %p106
      $region42: #{discriminator_forward.3} parent=39 // pred_check_branch
        %801 = sbr.rel (%p799) target = $region44
      $region43: #{discriminator_forward.3} parent=39 // pred_region
        %s802 = smul.u32 32, %s15
        %p803 = scmp.lt.s32.totalorder %s802, 63
        %s804 = scalar_select %p803, %s802, 63
        %s805 = smul.addr %s804, 4
        %s806 = scalar_lea.vmem %s3, %s805
      $region44: #{discriminator_forward.3} parent=39 // pred_fallthru
        _
    $region40: #{discriminator_forward.3} parent=5 // pred_fallthru
      _
  $region6: #{discriminator_forward.3} parent=0 // loop_footer
    %s13 = sadd.s32 1, %s9
  $region7: #{discriminator_forward.3} parent=0 // loop_footer_branch
    %8 = sbr.rel target = $region3
  $region8: #{discriminator_forward.3} parent=0 // loop_exit
    _

// kernel: discriminator_forward.4
$region0: #{discriminator_forward.4}
  #allocation0 [shape = 'u32[]', space=smem, size = 0x4, offset = 0x4, fixed_abs, tag = 'smem constant byte address 0x4 - core index']
  #allocation1 [shape = 'u32[144,128]{1,0:T(1,128)}', space=vmem, size = 0x12000, scoped, tag = 'internal scratch']
  %s0 = inlined_call_operand.vmem [shape: bf16[128,128], index: 0, kind: input, shape index: {}]
  %s1 = inlined_call_operand.vmem [shape: bf16[128,16], index: 1, kind: input, shape index: {}]
  %s2 = inlined_call_operand.vmem [shape: f32[1,16], index: 2, kind: input, shape index: {}]
  %s3 = inlined_call_operand.vmem [shape: bf16[128,16], index: 3, kind: output, shape index: {}]
  %s4 = sld [smem:[#allocation0]]
  $region45: #{discriminator_forward.4} parent=0
    _
  %s6 = ssub.s32 1, %s4
  %s7 = scalar_select 0, %s6, %s4
  loop: start=0, step=1, limit=4
  $region2: #{discriminator_forward.4} parent=0 // loop_pre_header
    _
  $region3: #{discriminator_forward.4} parent=0 // loop_header
    %s9 = sphi 0, %s13
    %p10 = scmp.ge.s32.totalorder %s9, 4
    %s19 = sphi 0, %s21
    %s22 = sphi 0, %s19
    %s23 = sphi 0, %s22
    %s39 = sphi 0, %s23
    %s43 = sphi 0, %s43
    %s45 = sphi 0, %s43
    %s46 = sphi 0, %s45
    %s60 = sphi 0, %s46
    %s64 = sphi 0, %s64
    %s66 = sphi 0, %s64
    %s67 = sphi 0, %s66
    %s81 = sphi 0, %s67
    %s87 = sphi 0, %s89
    %s90 = sphi 0, %s87
    %s91 = sphi 0, %s90
    %s107 = sphi 0, %s91
  $region4: #{discriminator_forward.4} parent=0 // loop_header_branch
    %12 = sbr.rel (%p10) target = $region8
  $region5: #{discriminator_forward.4} parent=0 // loop_body
    %s14 = ssub.s32 %s9, 1
    %s15 = ssub.s32 %s9, 2
    %s16 = sadd.s32 %s9, 1
    %s17 = ssub.s32 %s9, %s16
    %p18 = scmp.eq.s32.totalorder %s17, 0
    %s20 = sadd.s32 %s19, 1
    %s21 = scalar_select %p18, %s19, %s20
    %p24 = pneg %p18
    %p25 = scmp.eq.s32.totalorder %s9, 1
    %p26 = por %p24, %p25
    %p27 = scmp.ne.s32.totalorder %s19, %s22
    %p28 = scmp.eq.s32.totalorder %s9, 0
    %p29 = por %p27, %p28
    %p30 = scmp.ne.s32.totalorder %s19, %s22
    %p31 = scmp.eq.s32.totalorder %s14, 1
    %p32 = por %p30, %p31
    %p33 = scmp.ne.s32.totalorder %s22, %s23
    %p34 = scmp.eq.s32.totalorder %s14, 0
    %p35 = por %p33, %p34
    %p36 = scmp.ne.s32.totalorder %s22, %s23
    %p37 = scmp.eq.s32.totalorder %s15, 1
    %p38 = por %p36, %p37
    %p40 = scmp.ne.s32.totalorder %s23, %s39
    %p41 = scmp.eq.s32.totalorder %s15, 0
    %p42 = por %p40, %p41
    %s44 = sadd.s32 %s43, 1
    %p47 = scmp.eq.s32.totalorder %s9, 1
    %p48 = scmp.ne.s32.totalorder %s43, %s45
    %p49 = scmp.eq.s32.totalorder %s9, 0
    %p50 = por %p48, %p49
    %p51 = scmp.ne.s32.totalorder %s43, %s45
    %p52 = scmp.eq.s32.totalorder %s14, 1
    %p53 = por %p51, %p52
    %p54 = scmp.ne.s32.totalorder %s45, %s46
    %p55 = scmp.eq.s32.totalorder %s14, 0
    %p56 = por %p54, %p55
    %p57 = scmp.ne.s32.totalorder %s45, %s46
    %p58 = scmp.eq.s32.totalorder %s15, 1
    %p59 = por %p57, %p58
    %p61 = scmp.ne.s32.totalorder %s46, %s60
    %p62 = scmp.eq.s32.totalorder %s15, 0
    %p63 = por %p61, %p62
    %s65 = sadd.s32 %s64, 1
    %p68 = scmp.eq.s32.totalorder %s9, 1
    %p69 = scmp.ne.s32.totalorder %s64, %s66
    %p70 = scmp.eq.s32.totalorder %s9, 0
    %p71 = por %p69, %p70
    %p72 = scmp.ne.s32.totalorder %s64, %s66
    %p73 = scmp.eq.s32.totalorder %s14, 1
    %p74 = por %p72, %p73
    %p75 = scmp.ne.s32.totalorder %s66, %s67
    %p76 = scmp.eq.s32.totalorder %s14, 0
    %p77 = por %p75, %p76
    %p78 = scmp.ne.s32.totalorder %s66, %s67
    %p79 = scmp.eq.s32.totalorder %s15, 1
    %p80 = por %p78, %p79
    %p82 = scmp.ne.s32.totalorder %s67, %s81
    %p83 = scmp.eq.s32.totalorder %s15, 0
    %p84 = por %p82, %p83
    %s85 = ssub.s32 %s9, %s16
    %p86 = scmp.eq.s32.totalorder %s85, 0
    %s88 = sadd.s32 %s87, 1
    %s89 = scalar_select %p86, %s87, %s88
    %p92 = pneg %p86
    %p93 = scmp.eq.s32.totalorder %s9, 1
    %p94 = por %p92, %p93
    %p95 = scmp.ne.s32.totalorder %s87, %s90
    %p96 = scmp.eq.s32.totalorder %s9, 0
    %p97 = por %p95, %p96
    %p98 = scmp.ne.s32.totalorder %s87, %s90
    %p99 = scmp.eq.s32.totalorder %s14, 1
    %p100 = por %p98, %p99
    %p101 = scmp.ne.s32.totalorder %s90, %s91
    %p102 = scmp.eq.s32.totalorder %s14, 0
    %p103 = por %p101, %p102
    %p104 = scmp.ne.s32.totalorder %s90, %s91
    %p105 = scmp.eq.s32.totalorder %s15, 1
    %p106 = por %p104, %p105
    %p108 = scmp.ne.s32.totalorder %s91, %s107
    %p109 = scmp.eq.s32.totalorder %s15, 0
    %p110 = por %p108, %p109
    %p111 = scmp.le.s32.totalorder 1, %s9
    %p112 = scmp.lt.s32.totalorder %s9, 3
    %p113 = pnand %p111, %p112
    %p114 = pneg %p113
    // Predicated region
    $region9: #{discriminator_forward.4} parent=5 // pred_check
      _
    $region10: #{discriminator_forward.4} parent=5 // pred_check_branch
      %116 = sbr.rel (%p113) target = $region12
    $region11: #{discriminator_forward.4} parent=5 // pred_region
      %s117 = ssub.s32 %s9, 1
      // Predicated region
      $region13: #{discriminator_forward.4} parent=11 // pred_check
        %p118 = pneg %p56
      $region14: #{discriminator_forward.4} parent=11 // pred_check_branch
        %120 = sbr.rel (%p118) target = $region16
      $region15: #{discriminator_forward.4} parent=11 // pred_region
        _
      $region16: #{discriminator_forward.4} parent=11 // pred_fallthru
        _
      // Predicated region
      $region17: #{discriminator_forward.4} parent=11 // pred_check
        %p121 = pneg %p77
      $region18: #{discriminator_forward.4} parent=11 // pred_check_branch
        %123 = sbr.rel (%p121) target = $region20
      $region19: #{discriminator_forward.4} parent=11 // pred_region
        _
      $region20: #{discriminator_forward.4} parent=11 // pred_fallthru
        _
    $region12: #{discriminator_forward.4} parent=5 // pred_fallthru
      _
    %p124 = scmp.lt.s32.totalorder %s9, 2
    // Predicated region
    $region21: #{discriminator_forward.4} parent=5 // pred_check
      %p125 = pneg %p124
    $region22: #{discriminator_forward.4} parent=5 // pred_check_branch
      %127 = sbr.rel (%p125) target = $region24
    $region23: #{discriminator_forward.4} parent=5 // pred_region
      // Predicated region
      $region25: #{discriminator_forward.4} parent=23 // pred_check
        %p128 = pneg %p29
      $region26: #{discriminator_forward.4} parent=23 // pred_check_branch
        %130 = sbr.rel (%p128) target = $region28
      $region27: #{discriminator_forward.4} parent=23 // pred_region
        %s131 = smul.u32 8, %s9
        %p132 = scmp.lt.s32.totalorder %s131, 15
        %s133 = scalar_select %p132, %s131, 15
        %s134 = smul.addr %s133, 4
        %s135 = scalar_lea.vmem %s0, %s134
        %s136 = smul.u32 8, %s9
      $region28: #{discriminator_forward.4} parent=23 // pred_fallthru
        _
    $region24: #{discriminator_forward.4} parent=5 // pred_fallthru
      _
    %p137 = scmp.le.s32.totalorder 1, %s9
    %p138 = scmp.lt.s32.totalorder %s9, 3
    %p139 = pnand %p137, %p138
    %p140 = pneg %p139
    // Predicated region
    $region29: #{discriminator_forward.4} parent=5 // pred_check
      _
    $region30: #{discriminator_forward.4} parent=5 // pred_check_branch
      %142 = sbr.rel (%p139) target = $region32
    $region31: #{discriminator_forward.4} parent=5 // pred_region
      %s143 = ssub.s32 %s9, 1
      %s144 = smul.u32 8, %s14
      %p145 = scmp.lt.s32.totalorder %s144, 15
      %s146 = scalar_select %p145, %s144, 15
      %s147 = smul.addr %s146, 4
      %s148 = scalar_lea.vmem %s0, %s147
      %p149 = pneg %p35
      %p150 = pneg %p32
      %p151 = pneg %p56
      %p152 = pneg %p53
      %p153 = pneg %p77
      %p154 = pneg %p74
      %p155 = pneg %p103
      %p156 = pneg %p100
      %s157 = smul.u32 8, %s14
      %p158 = scmp.lt.s32.totalorder %s157, 15
      %s159 = scalar_select %p158, %s157, 15
      %s160 = smul.addr %s159, 4
      %s161 = scalar_lea.vmem %s3, %s160
      %s162 = smul.u32 8, %s14
      %p163 = scmp.lt.s32.totalorder %s162, 15
      %s164 = scalar_select %p163, %s162, 15
      %s165 = smul.addr %s164, 4
      %s166 = scalar_lea.vmem %s0, %s165
      %s167 = smul.u32 8, %s14
      %s168 = smul.u32 8, %s14
      %p169 = scmp.lt.s32.totalorder %s168, 15
      %s170 = scalar_select %p169, %s168, 15
      %s171 = smul.addr %s170, 4
      %s172 = scalar_lea.vmem %s3, %s171
      %s173 = smul.u32 8, %s14
      %v175 = vld [vmem:[%s166] sm:$0xf]
      %v176 = vld [vmem:[%s166 + $0x4] sm:$0xf]
      %v177 = vld [vmem:[%s166 + $0x8] sm:$0xf]
      %v178 = vld [vmem:[%s166 + $0xc] sm:$0xf]
      %v179 = vld [vmem:[%s166 + $0x10] sm:$0xf]
      %v180 = vld [vmem:[%s166 + $0x14] sm:$0xf]
      %v181 = vld [vmem:[%s166 + $0x18] sm:$0xf]
      %v182 = vld [vmem:[%s166 + $0x1c] sm:$0xf]
      %v183 = vld [vmem:[%s1] sm:$0xf]
      %v184 = vld [vmem:[%s1 + $0x4] sm:$0xf]
      %v185 = vld [vmem:[%s1 + $0x8] sm:$0xf]
      %v186 = vld [vmem:[%s1 + $0xc] sm:$0xf]
      %v187 = vld [vmem:[%s1 + $0x10] sm:$0xf]
      %v188 = vld [vmem:[%s1 + $0x14] sm:$0xf]
      %v189 = vld [vmem:[%s1 + $0x18] sm:$0xf]
      %v190 = vld [vmem:[%s1 + $0x1c] sm:$0xf]
      %v191 = vld [vmem:[%s1 + $0x20] sm:$0xf]
      %v192 = vld [vmem:[%s1 + $0x24] sm:$0xf]
      %v193 = vld [vmem:[%s1 + $0x28] sm:$0xf]
      %v194 = vld [vmem:[%s1 + $0x2c] sm:$0xf]
      %v195 = vld [vmem:[%s1 + $0x30] sm:$0xf]
      %v196 = vld [vmem:[%s1 + $0x34] sm:$0xf]
      %v197 = vld [vmem:[%s1 + $0x38] sm:$0xf]
      %v198 = vld [vmem:[%s1 + $0x3c] sm:$0xf]
      %v199 = vld [vmem:[%s2] sm:$0x1]
      %v201 = vlaneseq
      %v202 = vshrl.u32 %v201, 7
      %v203 = vsub.s32 0, %v202
      %v204 = vrot.slane %v199, %v203
      %v214 = vunpack.c.l.b16 %v175
      %v215 = vunpack.c.l.b16 %v176
      %v216 = vunpack.c.l.b16 %v177
      %v217 = vunpack.c.l.b16 %v178
      %v218 = vunpack.c.l.b16 %v179
      %v219 = vunpack.c.l.b16 %v180
      %v220 = vunpack.c.l.b16 %v181
      %v221 = vunpack.c.l.b16 %v182
      %v222 = vpack.c.b16 %v215, %v214
      %v223 = vpack.c.b16 %v217, %v216
      %v224 = vpack.c.b16 %v219, %v218
      %v225 = vpack.c.b16 %v221, %v220
      %v246 = vunpack.c.l.b16 %v183
      %v247 = vunpack.c.l.b16 %v184
      %v248 = vunpack.c.l.b16 %v185
      %v249 = vunpack.c.l.b16 %v186
      %v250 = vunpack.c.l.b16 %v187
      %v251 = vunpack.c.l.b16 %v188
      %v252 = vunpack.c.l.b16 %v189
      %v253 = vunpack.c.l.b16 %v190
      %v254 = vunpack.c.l.b16 %v191
      %v255 = vunpack.c.l.b16 %v192
      %v256 = vunpack.c.l.b16 %v193
      %v257 = vunpack.c.l.b16 %v194
      %v258 = vunpack.c.l.b16 %v195
      %v259 = vunpack.c.l.b16 %v196
      %v260 = vunpack.c.l.b16 %v197
      %v261 = vunpack.c.l.b16 %v198
      %v262 = vpack.c.b16 %v247, %v246
      %v263 = vpack.c.b16 %v249, %v248
      %v264 = vpack.c.b16 %v251, %v250
      %v265 = vpack.c.b16 %v253, %v252
      %v266 = vpack.c.b16 %v255, %v254
      %v267 = vpack.c.b16 %v257, %v256
      %v268 = vpack.c.b16 %v259, %v258
      %v269 = vpack.c.b16 %v261, %v260
      %278 = vmatprep.subr.bf16.mxu0 0
      %279 = vmatpush1.bf16.msra.mxu0 %v262
      %280 = vmatprep.subr.bf16.mxu0 0
      %281 = vmatpush1.bf16.msra.mxu0 %v263
      %282 = vmatprep.subr.bf16.mxu0 0
      %283 = vmatpush1.bf16.msra.mxu0 %v264
      %284 = vmatprep.subr.bf16.mxu0 0
      %285 = vmatpush1.bf16.msra.mxu0 %v265
      %286 = vmatprep.subr.bf16.mxu0 0
      %287 = vmatpush1.bf16.msra.mxu0 %v266
      %288 = vmatprep.subr.bf16.mxu0 0
      %289 = vmatpush1.bf16.msra.mxu0 %v267
      %290 = vmatprep.subr.bf16.mxu0 0
      %291 = vmatpush1.bf16.msra.mxu0 %v268
      %292 = vmatprep.subr.bf16.mxu0 0
      %293 = vmatpush1.bf16.msra.mxu0 %v269
      %294 = vmatprep.subr.bf16.mxu0 0
      %295 = vmatpush1.bf16.msra.mxu0 0
      %296 = vmatprep.subr.bf16.mxu0 0
      %297 = vmatpush1.bf16.msra.mxu0 0
      %298 = vmatprep.subr.bf16.mxu0 0
      %299 = vmatpush1.bf16.msra.mxu0 0
      %300 = vmatprep.subr.bf16.mxu0 0
      %301 = vmatpush1.bf16.msra.mxu0 0
      %302 = vmatprep.subr.bf16.mxu0 0
      %303 = vmatpush1.bf16.msra.mxu0 0
      %304 = vmatprep.subr.bf16.mxu0 0
      %305 = vmatpush1.bf16.msra.mxu0 0
      %306 = vmatprep.subr.bf16.mxu0 0
      %307 = vmatpush1.bf16.msra.mxu0 0
      %308 = vmatprep.subr.bf16.mxu0 0
      %309 = vmatpush1.bf16.msra.mxu0 0
      %310 = vmatprep.mubr.bf16.mxu0 0
      %311 = vmatmul.mubr.bf16.gmra.mrb[0].mxu0 %v222
      %v312 = vpop.f32.mrb[0].mxu0
      %v313 = vadd.f32 %v204, %v312
      %v314 = vpop.f32.mrb[0].mxu0
      %v315 = vpop.f32.mrb[0].mxu0
      %v316 = vadd.f32 %v204, %v315
      %v317 = vpop.f32.mrb[0].mxu0
      %318 = vmatprep.mubr.bf16.mxu0 0
      %319 = vmatmul.mubr.bf16.gmra.mrb[0].mxu0 %v223
      %v320 = vpop.f32.mrb[0].mxu0
      %v321 = vadd.f32 %v204, %v320
      %v322 = vpop.f32.mrb[0].mxu0
      %v323 = vpop.f32.mrb[0].mxu0
      %v324 = vadd.f32 %v204, %v323
      %v325 = vpop.f32.mrb[0].mxu0
      %326 = vmatprep.mubr.bf16.mxu0 0
      %327 = vmatmul.mubr.bf16.gmra.mrb[0].mxu0 %v224
      %v328 = vpop.f32.mrb[0].mxu0
      %v329 = vadd.f32 %v204, %v328
      %v330 = vpop.f32.mrb[0].mxu0
      %v331 = vpop.f32.mrb[0].mxu0
      %v332 = vadd.f32 %v204, %v331
      %v333 = vpop.f32.mrb[0].mxu0
      %334 = vmatprep.mubr.bf16.mxu0 0
      %335 = vmatmul.mubr.bf16.gmra.mrb[0].mxu0 %v225
      %v336 = vpop.f32.mrb[0].mxu0
      %v337 = vadd.f32 %v204, %v336
      %v338 = vpop.f32.mrb[0].mxu0
      %v339 = vpop.f32.mrb[0].mxu0
      %v340 = vadd.f32 %v204, %v339
      %v341 = vpop.f32.mrb[0].mxu0
      %342 = vdwg.mxu0
      %vm343 = vcmp.ge.f32.partialorder %v313, 0.0
      %vm344 = vcmp.ge.f32.partialorder %v316, 0.0
      %vm345 = vcmp.ge.f32.partialorder %v321, 0.0
      %vm346 = vcmp.ge.f32.partialorder %v324, 0.0
      %vm347 = vcmp.ge.f32.partialorder %v329, 0.0
      %vm348 = vcmp.ge.f32.partialorder %v332, 0.0
      %vm349 = vcmp.ge.f32.partialorder %v337, 0.0
      %vm350 = vcmp.ge.f32.partialorder %v340, 0.0
      %v351 = vmul.f32 %v313, 0.2
      %v352 = vmul.f32 %v316, 0.2
      %v353 = vmul.f32 %v321, 0.2
      %v354 = vmul.f32 %v324, 0.2
      %v355 = vmul.f32 %v329, 0.2
      %v356 = vmul.f32 %v332, 0.2
      %v357 = vmul.f32 %v337, 0.2
      %v358 = vmul.f32 %v340, 0.2
      %v359 = vsel %vm343, %v313, %v351
      %v360 = vsel %vm344, %v316, %v352
      %v361 = vsel %vm345, %v321, %v353
      %v362 = vsel %vm346, %v324, %v354
      %v363 = vsel %vm347, %v329, %v355
      %v364 = vsel %vm348, %v332, %v356
      %v365 = vsel %vm349, %v337, %v357
      %v366 = vsel %vm350, %v340, %v358
      %v367 = vpack.c.bf16 %v360, %v359
      %v368 = vpack.c.bf16 %v362, %v361
      %v369 = vpack.c.bf16 %v364, %v363
      %v370 = vpack.c.bf16 %v366, %v365
      %v375 = vunpack.c.l.b16 %v367
      %v376 = vunpack.c.h.b16 %v367
      %v377 = vunpack.c.l.b16 %v368
      %v378 = vunpack.c.h.b16 %v368
      %v379 = vunpack.c.l.b16 %v369
      %v380 = vunpack.c.h.b16 %v369
      %v381 = vunpack.c.l.b16 %v370
      %v382 = vunpack.c.h.b16 %v370
      %v383 = vpack.c.b16 %v375, %v375
      %v384 = vpack.c.b16 %v376, %v376
      %v385 = vpack.c.b16 %v377, %v377
      %v386 = vpack.c.b16 %v378, %v378
      %v387 = vpack.c.b16 %v379, %v379
      %v388 = vpack.c.b16 %v380, %v380
      %v389 = vpack.c.b16 %v381, %v381
      %v390 = vpack.c.b16 %v382, %v382
      %vm399 = vcmask 125952
      %400 = vst.msk [vmem:[%s172] sm:$0xf] %vm399, %v383
      %401 = vst.msk [vmem:[%s172 + $0x4] sm:$0xf] %vm399, %v384
      %402 = vst.msk [vmem:[%s172 + $0x8] sm:$0xf] %vm399, %v385
      %403 = vst.msk [vmem:[%s172 + $0xc] sm:$0xf] %vm399, %v386
      %404 = vst.msk [vmem:[%s172 + $0x10] sm:$0xf] %vm399, %v387
      %405 = vst.msk [vmem:[%s172 + $0x14] sm:$0xf] %vm399, %v388
      %406 = vst.msk [vmem:[%s172 + $0x18] sm:$0xf] %vm399, %v389
      %407 = vst.msk [vmem:[%s172 + $0x1c] sm:$0xf] %vm399, %v390
      %s408 = smul.u32 8, %s14
      %p409 = scmp.lt.s32.totalorder %s408, 15
      %s410 = scalar_select %p409, %s408, 15
      %s411 = smul.addr %s410, 4
      %s412 = scalar_lea.vmem %s3, %s411
      // Predicated region
      $region33: #{discriminator_forward.4} parent=31 // pred_check
        %p413 = pneg %p100
      $region34: #{discriminator_forward.4} parent=31 // pred_check_branch
        %415 = sbr.rel (%p413) target = $region36
      $region35: #{discriminator_forward.4} parent=31 // pred_region
        %s416 = smul.u32 8, %s14
      $region36: #{discriminator_forward.4} parent=31 // pred_fallthru
        _
    $region32: #{discriminator_forward.4} parent=5 // pred_fallthru
      _
    %p417 = scmp.le.s32.totalorder 2, %s9
    // Predicated region
    $region37: #{discriminator_forward.4} parent=5 // pred_check
      %p418 = pneg %p417
    $region38: #{discriminator_forward.4} parent=5 // pred_check_branch
      %420 = sbr.rel (%p418) target = $region40
    $region39: #{discriminator_forward.4} parent=5 // pred_region
      %s421 = ssub.s32 %s9, 2
      // Predicated region
      $region41: #{discriminator_forward.4} parent=39 // pred_check
        %p422 = pneg %p106
      $region42: #{discriminator_forward.4} parent=39 // pred_check_branch
        %424 = sbr.rel (%p422) target = $region44
      $region43: #{discriminator_forward.4} parent=39 // pred_region
        %s425 = smul.u32 8, %s15
        %p426 = scmp.lt.s32.totalorder %s425, 15
        %s427 = scalar_select %p426, %s425, 15
        %s428 = smul.addr %s427, 4
        %s429 = scalar_lea.vmem %s3, %s428
      $region44: #{discriminator_forward.4} parent=39 // pred_fallthru
        _
    $region40: #{discriminator_forward.4} parent=5 // pred_fallthru
      _
  $region6: #{discriminator_forward.4} parent=0 // loop_footer
    %s13 = sadd.s32 1, %s9
  $region7: #{discriminator_forward.4} parent=0 // loop_footer_branch
    %8 = sbr.rel target = $region3
  $region8: #{discriminator_forward.4} parent=0 // loop_exit
    _

// kernel: discriminator_forward.5
$region0: #{discriminator_forward.5}
  #allocation0 [shape = 'u32[]', space=smem, size = 0x4, offset = 0x4, fixed_abs, tag = 'smem constant byte address 0x4 - core index']
  #allocation1 [shape = 'u32[144,128]{1,0:T(1,128)}', space=vmem, size = 0x12000, scoped, tag = 'internal scratch']
  #allocation2 [shape = 'f32[32,32]{1,0:T(8,128)}', space=vmem, size = 0x4000, scoped, tag = 'scratch operand']
  %s0 = inlined_call_operand.vmem [shape: bf16[32,256], index: 0, kind: input, shape index: {}]
  %s1 = inlined_call_operand.vmem [shape: bf16[256,32], index: 1, kind: input, shape index: {}]
  %s2 = inlined_call_operand.vmem [shape: f32[1,32], index: 2, kind: input, shape index: {}]
  %s3 = inlined_call_operand.vmem [shape: bf16[512,11], index: 3, kind: input, shape index: {}]
  %s4 = inlined_call_operand.vmem [shape: f32[1,11], index: 4, kind: input, shape index: {}]
  %s5 = inlined_call_operand.vmem [shape: f32[2,11], index: 5, kind: output, shape index: {}]
  %s6 = sld [smem:[#allocation0]]
  $region30: #{discriminator_forward.5} parent=0
    _
  %s8 = ssub.s32 1, %s6
  %s9 = scalar_select 0, %s8, %s6
  // Predicated region
  $region2: #{discriminator_forward.5} parent=0 // pred_check
    _
  $region3: #{discriminator_forward.5} parent=0 // pred_check_branch
    %11 = sbr.rel (0) target = $region5
  $region4: #{discriminator_forward.5} parent=0 // pred_region
    _
  $region5: #{discriminator_forward.5} parent=0 // pred_fallthru
    _
  // Predicated region
  $region6: #{discriminator_forward.5} parent=0 // pred_check
    _
  $region7: #{discriminator_forward.5} parent=0 // pred_check_branch
    %13 = sbr.rel (0) target = $region9
  $region8: #{discriminator_forward.5} parent=0 // pred_region
    _
  $region9: #{discriminator_forward.5} parent=0 // pred_fallthru
    _
  // Predicated region
  $region10: #{discriminator_forward.5} parent=0 // pred_check
    _
  $region11: #{discriminator_forward.5} parent=0 // pred_check_branch
    %15 = sbr.rel (0) target = $region13
  $region12: #{discriminator_forward.5} parent=0 // pred_region
    _
  $region13: #{discriminator_forward.5} parent=0 // pred_fallthru
    _
  // Predicated region
  $region14: #{discriminator_forward.5} parent=0 // pred_check
    _
  $region15: #{discriminator_forward.5} parent=0 // pred_check_branch
    %17 = sbr.rel (0) target = $region17
  $region16: #{discriminator_forward.5} parent=0 // pred_region
    _
  $region17: #{discriminator_forward.5} parent=0 // pred_fallthru
    _
  // Predicated region
  $region18: #{discriminator_forward.5} parent=0 // pred_check
    _
  $region19: #{discriminator_forward.5} parent=0 // pred_check_branch
    %19 = sbr.rel (0) target = $region21
  $region20: #{discriminator_forward.5} parent=0 // pred_region
    _
  $region21: #{discriminator_forward.5} parent=0 // pred_fallthru
    _
  %v21 = vld [vmem:[%s0] sm:$0xff]
  %v22 = vld [vmem:[%s0 + $0x8] sm:$0xff]
  %v23 = vld [vmem:[%s0 + $0x10] sm:$0xff]
  %v24 = vld [vmem:[%s0 + $0x18] sm:$0xff]
  %v25 = vld [vmem:[%s1] sm:$0xf]
  %v26 = vld [vmem:[%s1 + $0x4] sm:$0xf]
  %v27 = vld [vmem:[%s1 + $0x8] sm:$0xf]
  %v28 = vld [vmem:[%s1 + $0xc] sm:$0xf]
  %v29 = vld [vmem:[%s1 + $0x10] sm:$0xf]
  %v30 = vld [vmem:[%s1 + $0x14] sm:$0xf]
  %v31 = vld [vmem:[%s1 + $0x18] sm:$0xf]
  %v32 = vld [vmem:[%s1 + $0x1c] sm:$0xf]
  %v33 = vld [vmem:[%s1 + $0x20] sm:$0xf]
  %v34 = vld [vmem:[%s1 + $0x24] sm:$0xf]
  %v35 = vld [vmem:[%s1 + $0x28] sm:$0xf]
  %v36 = vld [vmem:[%s1 + $0x2c] sm:$0xf]
  %v37 = vld [vmem:[%s1 + $0x30] sm:$0xf]
  %v38 = vld [vmem:[%s1 + $0x34] sm:$0xf]
  %v39 = vld [vmem:[%s1 + $0x38] sm:$0xf]
  %v40 = vld [vmem:[%s1 + $0x3c] sm:$0xf]
  %v41 = vld [vmem:[%s1 + $0x40] sm:$0xf]
  %v42 = vld [vmem:[%s1 + $0x44] sm:$0xf]
  %v43 = vld [vmem:[%s1 + $0x48] sm:$0xf]
  %v44 = vld [vmem:[%s1 + $0x4c] sm:$0xf]
  %v45 = vld [vmem:[%s1 + $0x50] sm:$0xf]
  %v46 = vld [vmem:[%s1 + $0x54] sm:$0xf]
  %v47 = vld [vmem:[%s1 + $0x58] sm:$0xf]
  %v48 = vld [vmem:[%s1 + $0x5c] sm:$0xf]
  %v49 = vld [vmem:[%s1 + $0x60] sm:$0xf]
  %v50 = vld [vmem:[%s1 + $0x64] sm:$0xf]
  %v51 = vld [vmem:[%s1 + $0x68] sm:$0xf]
  %v52 = vld [vmem:[%s1 + $0x6c] sm:$0xf]
  %v53 = vld [vmem:[%s1 + $0x70] sm:$0xf]
  %v54 = vld [vmem:[%s1 + $0x74] sm:$0xf]
  %v55 = vld [vmem:[%s1 + $0x78] sm:$0xf]
  %v56 = vld [vmem:[%s1 + $0x7c] sm:$0xf]
  %v57 = vld [vmem:[%s2] sm:$0x1]
  %v59 = vlaneseq
  %v60 = vshrl.u32 %v59, 7
  %v61 = vsub.s32 0, %v60
  %v62 = vrot.slane %v57, %v61
  %v68 = vunpack.c.l.b16 %v21
  %v69 = vunpack.c.h.b16 %v21
  %v70 = vunpack.c.l.b16 %v22
  %v71 = vunpack.c.h.b16 %v22
  %v72 = vunpack.c.l.b16 %v23
  %v73 = vunpack.c.h.b16 %v23
  %v74 = vunpack.c.l.b16 %v24
  %v75 = vunpack.c.h.b16 %v24
  %v76 = vpack.c.b16 %v70, %v68
  %v77 = vpack.c.b16 %v71, %v69
  %v78 = vpack.c.b16 %v74, %v72
  %v79 = vpack.c.b16 %v75, %v73
  %v116 = vunpack.c.l.b16 %v25
  %v117 = vunpack.c.l.b16 %v26
  %v118 = vunpack.c.l.b16 %v27
  %v119 = vunpack.c.l.b16 %v28
  %v120 = vunpack.c.l.b16 %v29
  %v121 = vunpack.c.l.b16 %v30
  %v122 = vunpack.c.l.b16 %v31
  %v123 = vunpack.c.l.b16 %v32
  %v124 = vunpack.c.l.b16 %v33
  %v125 = vunpack.c.l.b16 %v34
  %v126 = vunpack.c.l.b16 %v35
  %v127 = vunpack.c.l.b16 %v36
  %v128 = vunpack.c.l.b16 %v37
  %v129 = vunpack.c.l.b16 %v38
  %v130 = vunpack.c.l.b16 %v39
  %v131 = vunpack.c.l.b16 %v40
  %v132 = vunpack.c.l.b16 %v41
  %v133 = vunpack.c.l.b16 %v42
  %v134 = vunpack.c.l.b16 %v43
  %v135 = vunpack.c.l.b16 %v44
  %v136 = vunpack.c.l.b16 %v45
  %v137 = vunpack.c.l.b16 %v46
  %v138 = vunpack.c.l.b16 %v47
  %v139 = vunpack.c.l.b16 %v48
  %v140 = vunpack.c.l.b16 %v49
  %v141 = vunpack.c.l.b16 %v50
  %v142 = vunpack.c.l.b16 %v51
  %v143 = vunpack.c.l.b16 %v52
  %v144 = vunpack.c.l.b16 %v53
  %v145 = vunpack.c.l.b16 %v54
  %v146 = vunpack.c.l.b16 %v55
  %v147 = vunpack.c.l.b16 %v56
  %v148 = vpack.c.b16 %v117, %v116
  %v149 = vpack.c.b16 %v119, %v118
  %v150 = vpack.c.b16 %v121, %v120
  %v151 = vpack.c.b16 %v123, %v122
  %v152 = vpack.c.b16 %v125, %v124
  %v153 = vpack.c.b16 %v127, %v126
  %v154 = vpack.c.b16 %v129, %v128
  %v155 = vpack.c.b16 %v131, %v130
  %v156 = vpack.c.b16 %v133, %v132
  %v157 = vpack.c.b16 %v135, %v134
  %v158 = vpack.c.b16 %v137, %v136
  %v159 = vpack.c.b16 %v139, %v138
  %v160 = vpack.c.b16 %v141, %v140
  %v161 = vpack.c.b16 %v143, %v142
  %v162 = vpack.c.b16 %v145, %v144
  %v163 = vpack.c.b16 %v147, %v146
  %180 = vmatprep.subr.bf16.mxu0 0
  %181 = vmatpush1.bf16.msra.mxu0 %v148
  %182 = vmatprep.subr.bf16.mxu0 0
  %183 = vmatpush1.bf16.msra.mxu0 %v149
  %184 = vmatprep.subr.bf16.mxu0 0
  %185 = vmatpush1.bf16.msra.mxu0 %v150
  %186 = vmatprep.subr.bf16.mxu0 0
  %187 = vmatpush1.bf16.msra.mxu0 %v151
  %188 = vmatprep.subr.bf16.mxu0 0
  %189 = vmatpush1.bf16.msra.mxu0 %v152
  %190 = vmatprep.subr.bf16.mxu0 0
  %191 = vmatpush1.bf16.msra.mxu0 %v153
  %192 = vmatprep.subr.bf16.mxu0 0
  %193 = vmatpush1.bf16.msra.mxu0 %v154
  %194 = vmatprep.subr.bf16.mxu0 0
  %195 = vmatpush1.bf16.msra.mxu0 %v155
  %196 = vmatprep.subr.bf16.mxu0 0
  %197 = vmatpush1.bf16.msra.mxu0 %v156
  %198 = vmatprep.subr.bf16.mxu0 0
  %199 = vmatpush1.bf16.msra.mxu0 %v157
  %200 = vmatprep.subr.bf16.mxu0 0
  %201 = vmatpush1.bf16.msra.mxu0 %v158
  %202 = vmatprep.subr.bf16.mxu0 0
  %203 = vmatpush1.bf16.msra.mxu0 %v159
  %204 = vmatprep.subr.bf16.mxu0 0
  %205 = vmatpush1.bf16.msra.mxu0 %v160
  %206 = vmatprep.subr.bf16.mxu0 0
  %207 = vmatpush1.bf16.msra.mxu0 %v161
  %208 = vmatprep.subr.bf16.mxu0 0
  %209 = vmatpush1.bf16.msra.mxu0 %v162
  %210 = vmatprep.subr.bf16.mxu0 0
  %211 = vmatpush1.bf16.msra.mxu0 %v163
  %212 = vmatprep.mubr.bf16.mxu0 %v77
  %213 = vmatmul.mubr.bf16.gmra.mrb[0].mxu0 %v76
  %v214 = vpop.f32.mrb[0].mxu0
  %v215 = vadd.f32 %v62, %v214
  %v216 = vpop.f32.mrb[0].mxu0
  %v217 = vpop.f32.mrb[0].mxu0
  %v218 = vadd.f32 %v62, %v217
  %v219 = vpop.f32.mrb[0].mxu0
  %220 = vmatprep.mubr.bf16.mxu0 %v79
  %221 = vmatmul.mubr.bf16.gmra.mrb[0].mxu0 %v78
  %v222 = vpop.f32.mrb[0].mxu0
  %v223 = vadd.f32 %v62, %v222
  %v224 = vpop.f32.mrb[0].mxu0
  %v225 = vpop.f32.mrb[0].mxu0
  %v226 = vadd.f32 %v62, %v225
  %v227 = vpop.f32.mrb[0].mxu0
  %228 = vdwg.mxu0
  %vm229 = vcmp.ge.f32.partialorder %v215, 0.0
  %vm230 = vcmp.ge.f32.partialorder %v218, 0.0
  %vm231 = vcmp.ge.f32.partialorder %v223, 0.0
  %vm232 = vcmp.ge.f32.partialorder %v226, 0.0
  %v233 = vmul.f32 %v215, 0.2
  %v234 = vmul.f32 %v218, 0.2
  %v235 = vmul.f32 %v223, 0.2
  %v236 = vmul.f32 %v226, 0.2
  %v237 = vsel %vm229, %v215, %v233
  %v238 = vsel %vm230, %v218, %v234
  %v239 = vsel %vm231, %v223, %v235
  %v240 = vsel %vm232, %v226, %v236
  %vm241 = vcmask 261120
  %242 = vst.msk [vmem:[#allocation2] sm:$0xff] %vm241, %v237
  %243 = vst.msk [vmem:[#allocation2 + $0x8] sm:$0xff] %vm241, %v238
  %244 = vst.msk [vmem:[#allocation2 + $0x10] sm:$0xff] %vm241, %v239
  %245 = vst.msk [vmem:[#allocation2 + $0x18] sm:$0xff] %vm241, %v240
  %v246 = vld [vmem:[%s4] sm:$0x1]
  %v248 = vlaneseq
  %v249 = vshrl.u32 %v248, 7
  %v250 = vsub.s32 0, %v249
  %v251 = vrot.slane %v246, %v250
  %v253 = vld [vmem:[#allocation2] sm:$0x3]
  %v254 = vpack.c.bf16 %v253, %v253
  %v255 = vld [vmem:[%s3] sm:$0xf]
  %v256 = vld [vmem:[%s3 + $0x4] sm:$0xf]
  %v257 = vld [vmem:[%s3 + $0x8] sm:$0xf]
  %v258 = vld [vmem:[%s3 + $0xc] sm:$0xf]
  %v263 = vunpack.c.l.b16 %v255
  %v264 = vunpack.c.l.b16 %v256
  %v265 = vunpack.c.l.b16 %v257
  %v266 = vunpack.c.l.b16 %v258
  %v267 = vpack.c.b16 %v264, %v263
  %v268 = vpack.c.b16 %v266, %v265
  %v272 = vsel %vm241, %v254, 0
  %274 = vmatprep.subr.bf16.mxu0 0
  %275 = vmatpush1.bf16.msra.mxu0 %v267
  %276 = vmatprep.subr.bf16.mxu0 0
  %277 = vmatpush1.bf16.msra.mxu0 %v268
  %278 = vmatprep.subr.bf16.mxu0 0
  %279 = vmatpush1.bf16.msra.mxu0 0
  %280 = vmatprep.subr.bf16.mxu0 0
  %281 = vmatpush1.bf16.msra.mxu0 0
  %282 = vmatprep.subr.bf16.mxu0 0
  %283 = vmatpush1.bf16.msra.mxu0 0
  %284 = vmatprep.subr.bf16.mxu0 0
  %285 = vmatpush1.bf16.msra.mxu0 0
  %286 = vmatprep.subr.bf16.mxu0 0
  %287 = vmatpush1.bf16.msra.mxu0 0
  %288 = vmatprep.subr.bf16.mxu0 0
  %289 = vmatpush1.bf16.msra.mxu0 0
  %290 = vmatprep.subr.bf16.mxu0 0
  %291 = vmatpush1.bf16.msra.mxu0 0
  %292 = vmatprep.subr.bf16.mxu0 0
  %293 = vmatpush1.bf16.msra.mxu0 0
  %294 = vmatprep.subr.bf16.mxu0 0
  %295 = vmatpush1.bf16.msra.mxu0 0
  %296 = vmatprep.subr.bf16.mxu0 0
  %297 = vmatpush1.bf16.msra.mxu0 0
  %298 = vmatprep.subr.bf16.mxu0 0
  %299 = vmatpush1.bf16.msra.mxu0 0
  %300 = vmatprep.subr.bf16.mxu0 0
  %301 = vmatpush1.bf16.msra.mxu0 0
  %302 = vmatprep.subr.bf16.mxu0 0
  %303 = vmatpush1.bf16.msra.mxu0 0
  %304 = vmatprep.subr.bf16.mxu0 0
  %305 = vmatpush1.bf16.msra.mxu0 0
  %306 = vmatprep.mubr.bf16.mxu0 0
  %307 = vmatmul.mubr.bf16.gmra.mrb[0].mxu0 %v272
  %v308 = vpop.f32.mrb[0].mxu0
  %v309 = vadd.f32 0.0, %v308
  %v310 = vpop.f32.mrb[0].mxu0
  %v311 = vpop.f32.mrb[0].mxu0
  %v312 = vpop.f32.mrb[0].mxu0
  %313 = vdwg.mxu0
  %v314 = vadd.f32 %v251, %v309
  %v315 = vld [vmem:[#allocation2 + $0x2] sm:$0x3]
  %v316 = vpack.c.bf16 %v315, %v315
  %v317 = vld [vmem:[%s3 + $0x10] sm:$0xf]
  %v318 = vld [vmem:[%s3 + $0x14] sm:$0xf]
  %v319 = vld [vmem:[%s3 + $0x18] sm:$0xf]
  %v320 = vld [vmem:[%s3 + $0x1c] sm:$0xf]
  %v325 = vunpack.c.l.b16 %v317
  %v326 = vunpack.c.l.b16 %v318
  %v327 = vunpack.c.l.b16 %v319
  %v328 = vunpack.c.l.b16 %v320
  %v329 = vpack.c.b16 %v326, %v325
  %v330 = vpack.c.b16 %v328, %v327
  %v334 = vsel %vm241, %v316, 0
  %336 = vmatprep.subr.bf16.mxu0 0
  %337 = vmatpush1.bf16.msra.mxu0 %v329
  %338 = vmatprep.subr.bf16.mxu0 0
  %339 = vmatpush1.bf16.msra.mxu0 %v330
  %340 = vmatprep.subr.bf16.mxu0 0
  %341 = vmatpush1.bf16.msra.mxu0 0
  %342 = vmatprep.subr.bf16.mxu0 0
  %343 = vmatpush1.bf16.msra.mxu0 0
  %344 = vmatprep.subr.bf16.mxu0 0
  %345 = vmatpush1.bf16.msra.mxu0 0
  %346 = vmatprep.subr.bf16.mxu0 0
  %347 = vmatpush1.bf16.msra.mxu0 0
  %348 = vmatprep.subr.bf16.mxu0 0
  %349 = vmatpush1.bf16.msra.mxu0 0
  %350 = vmatprep.subr.bf16.mxu0 0
  %351 = vmatpush1.bf16.msra.mxu0 0
  %352 = vmatprep.subr.bf16.mxu0 0
  %353 = vmatpush1.bf16.msra.mxu0 0
  %354 = vmatprep.subr.bf16.mxu0 0
  %355 = vmatpush1.bf16.msra.mxu0 0
  %356 = vmatprep.subr.bf16.mxu0 0
  %357 = vmatpush1.bf16.msra.mxu0 0
  %358 = vmatprep.subr.bf16.mxu0 0
  %359 = vmatpush1.bf16.msra.mxu0 0
  %360 = vmatprep.subr.bf16.mxu0 0
  %361 = vmatpush1.bf16.msra.mxu0 0
  %362 = vmatprep.subr.bf16.mxu0 0
  %363 = vmatpush1.bf16.msra.mxu0 0
  %364 = vmatprep.subr.bf16.mxu0 0
  %365 = vmatpush1.bf16.msra.mxu0 0
  %366 = vmatprep.subr.bf16.mxu0 0
  %367 = vmatpush1.bf16.msra.mxu0 0
  %368 = vmatprep.mubr.bf16.mxu0 0
  %369 = vmatmul.mubr.bf16.gmra.mrb[0].mxu0 %v334
  %v370 = vpop.f32.mrb[0].mxu0
  %v371 = vadd.f32 0.0, %v370
  %v372 = vpop.f32.mrb[0].mxu0
  %v373 = vpop.f32.mrb[0].mxu0
  %v374 = vpop.f32.mrb[0].mxu0
  %375 = vdwg.mxu0
  %v376 = vadd.f32 %v314, %v371
  %v377 = vld [vmem:[#allocation2 + $0x4] sm:$0x3]
  %v378 = vpack.c.bf16 %v377, %v377
  %v379 = vld [vmem:[%s3 + $0x20] sm:$0xf]
  %v380 = vld [vmem:[%s3 + $0x24] sm:$0xf]
  %v381 = vld [vmem:[%s3 + $0x28] sm:$0xf]
  %v382 = vld [vmem:[%s3 + $0x2c] sm:$0xf]
  %v387 = vunpack.c.l.b16 %v379
  %v388 = vunpack.c.l.b16 %v380
  %v389 = vunpack.c.l.b16 %v381
  %v390 = vunpack.c.l.b16 %v382
  %v391 = vpack.c.b16 %v388, %v387
  %v392 = vpack.c.b16 %v390, %v389
  %v396 = vsel %vm241, %v378, 0
  %398 = vmatprep.subr.bf16.mxu0 0
  %399 = vmatpush1.bf16.msra.mxu0 %v391
  %400 = vmatprep.subr.bf16.mxu0 0
  %401 = vmatpush1.bf16.msra.mxu0 %v392
  %402 = vmatprep.subr.bf16.mxu0 0
  %403 = vmatpush1.bf16.msra.mxu0 0
  %404 = vmatprep.subr.bf16.mxu0 0
  %405 = vmatpush1.bf16.msra.mxu0 0
  %406 = vmatprep.subr.bf16.mxu0 0
  %407 = vmatpush1.bf16.msra.mxu0 0
  %408 = vmatprep.subr.bf16.mxu0 0
  %409 = vmatpush1.bf16.msra.mxu0 0
  %410 = vmatprep.subr.bf16.mxu0 0
  %411 = vmatpush1.bf16.msra.mxu0 0
  %412 = vmatprep.subr.bf16.mxu0 0
  %413 = vmatpush1.bf16.msra.mxu0 0
  %414 = vmatprep.subr.bf16.mxu0 0
  %415 = vmatpush1.bf16.msra.mxu0 0
  %416 = vmatprep.subr.bf16.mxu0 0
  %417 = vmatpush1.bf16.msra.mxu0 0
  %418 = vmatprep.subr.bf16.mxu0 0
  %419 = vmatpush1.bf16.msra.mxu0 0
  %420 = vmatprep.subr.bf16.mxu0 0
  %421 = vmatpush1.bf16.msra.mxu0 0
  %422 = vmatprep.subr.bf16.mxu0 0
  %423 = vmatpush1.bf16.msra.mxu0 0
  %424 = vmatprep.subr.bf16.mxu0 0
  %425 = vmatpush1.bf16.msra.mxu0 0
  %426 = vmatprep.subr.bf16.mxu0 0
  %427 = vmatpush1.bf16.msra.mxu0 0
  %428 = vmatprep.subr.bf16.mxu0 0
  %429 = vmatpush1.bf16.msra.mxu0 0
  %430 = vmatprep.mubr.bf16.mxu0 0
  %431 = vmatmul.mubr.bf16.gmra.mrb[0].mxu0 %v396
  %v432 = vpop.f32.mrb[0].mxu0
  %v433 = vadd.f32 0.0, %v432
  %v434 = vpop.f32.mrb[0].mxu0
  %v435 = vpop.f32.mrb[0].mxu0
  %v436 = vpop.f32.mrb[0].mxu0
  %437 = vdwg.mxu0
  %v438 = vadd.f32 %v376, %v433
  %v439 = vld [vmem:[#allocation2 + $0x6] sm:$0x3]
  %v440 = vpack.c.bf16 %v439, %v439
  %v441 = vld [vmem:[%s3 + $0x30] sm:$0xf]
  %v442 = vld [vmem:[%s3 + $0x34] sm:$0xf]
  %v443 = vld [vmem:[%s3 + $0x38] sm:$0xf]
  %v444 = vld [vmem:[%s3 + $0x3c] sm:$0xf]
  %v449 = vunpack.c.l.b16 %v441
  %v450 = vunpack.c.l.b16 %v442
  %v451 = vunpack.c.l.b16 %v443
  %v452 = vunpack.c.l.b16 %v444
  %v453 = vpack.c.b16 %v450, %v449
  %v454 = vpack.c.b16 %v452, %v451
  %v458 = vsel %vm241, %v440, 0
  %460 = vmatprep.subr.bf16.mxu0 0
  %461 = vmatpush1.bf16.msra.mxu0 %v453
  %462 = vmatprep.subr.bf16.mxu0 0
  %463 = vmatpush1.bf16.msra.mxu0 %v454
  %464 = vmatprep.subr.bf16.mxu0 0
  %465 = vmatpush1.bf16.msra.mxu0 0
  %466 = vmatprep.subr.bf16.mxu0 0
  %467 = vmatpush1.bf16.msra.mxu0 0
  %468 = vmatprep.subr.bf16.mxu0 0
  %469 = vmatpush1.bf16.msra.mxu0 0
  %470 = vmatprep.subr.bf16.mxu0 0
  %471 = vmatpush1.bf16.msra.mxu0 0
  %472 = vmatprep.subr.bf16.mxu0 0
  %473 = vmatpush1.bf16.msra.mxu0 0
  %474 = vmatprep.subr.bf16.mxu0 0
  %475 = vmatpush1.bf16.msra.mxu0 0
  %476 = vmatprep.subr.bf16.mxu0 0
  %477 = vmatpush1.bf16.msra.mxu0 0
  %478 = vmatprep.subr.bf16.mxu0 0
  %479 = vmatpush1.bf16.msra.mxu0 0
  %480 = vmatprep.subr.bf16.mxu0 0
  %481 = vmatpush1.bf16.msra.mxu0 0
  %482 = vmatprep.subr.bf16.mxu0 0
  %483 = vmatpush1.bf16.msra.mxu0 0
  %484 = vmatprep.subr.bf16.mxu0 0
  %485 = vmatpush1.bf16.msra.mxu0 0
  %486 = vmatprep.subr.bf16.mxu0 0
  %487 = vmatpush1.bf16.msra.mxu0 0
  %488 = vmatprep.subr.bf16.mxu0 0
  %489 = vmatpush1.bf16.msra.mxu0 0
  %490 = vmatprep.subr.bf16.mxu0 0
  %491 = vmatpush1.bf16.msra.mxu0 0
  %492 = vmatprep.mubr.bf16.mxu0 0
  %493 = vmatmul.mubr.bf16.gmra.mrb[0].mxu0 %v458
  %v494 = vpop.f32.mrb[0].mxu0
  %v495 = vadd.f32 0.0, %v494
  %v496 = vpop.f32.mrb[0].mxu0
  %v497 = vpop.f32.mrb[0].mxu0
  %v498 = vpop.f32.mrb[0].mxu0
  %499 = vdwg.mxu0
  %v500 = vadd.f32 %v438, %v495
  %v501 = vld [vmem:[#allocation2 + $0x8] sm:$0x3]
  %v502 = vpack.c.bf16 %v501, %v501
  %v503 = vld [vmem:[%s3 + $0x40] sm:$0xf]
  %v504 = vld [vmem:[%s3 + $0x44] sm:$0xf]
  %v505 = vld [vmem:[%s3 + $0x48] sm:$0xf]
  %v506 = vld [vmem:[%s3 + $0x4c] sm:$0xf]
  %v511 = vunpack.c.l.b16 %v503
  %v512 = vunpack.c.l.b16 %v504
  %v513 = vunpack.c.l.b16 %v505
  %v514 = vunpack.c.l.b16 %v506
  %v515 = vpack.c.b16 %v512, %v511
  %v516 = vpack.c.b16 %v514, %v513
  %v520 = vsel %vm241, %v502, 0
  %522 = vmatprep.subr.bf16.mxu0 0
  %523 = vmatpush1.bf16.msra.mxu0 %v515
  %524 = vmatprep.subr.bf16.mxu0 0
  %525 = vmatpush1.bf16.msra.mxu0 %v516
  %526 = vmatprep.subr.bf16.mxu0 0
  %527 = vmatpush1.bf16.msra.mxu0 0
  %528 = vmatprep.subr.bf16.mxu0 0
  %529 = vmatpush1.bf16.msra.mxu0 0
  %530 = vmatprep.subr.bf16.mxu0 0
  %531 = vmatpush1.bf16.msra.mxu0 0
  %532 = vmatprep.subr.bf16.mxu0 0
  %533 = vmatpush1.bf16.msra.mxu0 0
  %534 = vmatprep.subr.bf16.mxu0 0
  %535 = vmatpush1.bf16.msra.mxu0 0
  %536 = vmatprep.subr.bf16.mxu0 0
  %537 = vmatpush1.bf16.msra.mxu0 0
  %538 = vmatprep.subr.bf16.mxu0 0
  %539 = vmatpush1.bf16.msra.mxu0 0
  %540 = vmatprep.subr.bf16.mxu0 0
  %541 = vmatpush1.bf16.msra.mxu0 0
  %542 = vmatprep.subr.bf16.mxu0 0
  %543 = vmatpush1.bf16.msra.mxu0 0
  %544 = vmatprep.subr.bf16.mxu0 0
  %545 = vmatpush1.bf16.msra.mxu0 0
  %546 = vmatprep.subr.bf16.mxu0 0
  %547 = vmatpush1.bf16.msra.mxu0 0
  %548 = vmatprep.subr.bf16.mxu0 0
  %549 = vmatpush1.bf16.msra.mxu0 0
  %550 = vmatprep.subr.bf16.mxu0 0
  %551 = vmatpush1.bf16.msra.mxu0 0
  %552 = vmatprep.subr.bf16.mxu0 0
  %553 = vmatpush1.bf16.msra.mxu0 0
  %554 = vmatprep.mubr.bf16.mxu0 0
  %555 = vmatmul.mubr.bf16.gmra.mrb[0].mxu0 %v520
  %v556 = vpop.f32.mrb[0].mxu0
  %v557 = vadd.f32 0.0, %v556
  %v558 = vpop.f32.mrb[0].mxu0
  %v559 = vpop.f32.mrb[0].mxu0
  %v560 = vpop.f32.mrb[0].mxu0
  %561 = vdwg.mxu0
  %v562 = vadd.f32 %v500, %v557
  %v563 = vld [vmem:[#allocation2 + $0xa] sm:$0x3]
  %v564 = vpack.c.bf16 %v563, %v563
  %v565 = vld [vmem:[%s3 + $0x50] sm:$0xf]
  %v566 = vld [vmem:[%s3 + $0x54] sm:$0xf]
  %v567 = vld [vmem:[%s3 + $0x58] sm:$0xf]
  %v568 = vld [vmem:[%s3 + $0x5c] sm:$0xf]
  %v573 = vunpack.c.l.b16 %v565
  %v574 = vunpack.c.l.b16 %v566
  %v575 = vunpack.c.l.b16 %v567
  %v576 = vunpack.c.l.b16 %v568
  %v577 = vpack.c.b16 %v574, %v573
  %v578 = vpack.c.b16 %v576, %v575
  %v582 = vsel %vm241, %v564, 0
  %584 = vmatprep.subr.bf16.mxu0 0
  %585 = vmatpush1.bf16.msra.mxu0 %v577
  %586 = vmatprep.subr.bf16.mxu0 0
  %587 = vmatpush1.bf16.msra.mxu0 %v578
  %588 = vmatprep.subr.bf16.mxu0 0
  %589 = vmatpush1.bf16.msra.mxu0 0
  %590 = vmatprep.subr.bf16.mxu0 0
  %591 = vmatpush1.bf16.msra.mxu0 0
  %592 = vmatprep.subr.bf16.mxu0 0
  %593 = vmatpush1.bf16.msra.mxu0 0
  %594 = vmatprep.subr.bf16.mxu0 0
  %595 = vmatpush1.bf16.msra.mxu0 0
  %596 = vmatprep.subr.bf16.mxu0 0
  %597 = vmatpush1.bf16.msra.mxu0 0
  %598 = vmatprep.subr.bf16.mxu0 0
  %599 = vmatpush1.bf16.msra.mxu0 0
  %600 = vmatprep.subr.bf16.mxu0 0
  %601 = vmatpush1.bf16.msra.mxu0 0
  %602 = vmatprep.subr.bf16.mxu0 0
  %603 = vmatpush1.bf16.msra.mxu0 0
  %604 = vmatprep.subr.bf16.mxu0 0
  %605 = vmatpush1.bf16.msra.mxu0 0
  %606 = vmatprep.subr.bf16.mxu0 0
  %607 = vmatpush1.bf16.msra.mxu0 0
  %608 = vmatprep.subr.bf16.mxu0 0
  %609 = vmatpush1.bf16.msra.mxu0 0
  %610 = vmatprep.subr.bf16.mxu0 0
  %611 = vmatpush1.bf16.msra.mxu0 0
  %612 = vmatprep.subr.bf16.mxu0 0
  %613 = vmatpush1.bf16.msra.mxu0 0
  %614 = vmatprep.subr.bf16.mxu0 0
  %615 = vmatpush1.bf16.msra.mxu0 0
  %616 = vmatprep.mubr.bf16.mxu0 0
  %617 = vmatmul.mubr.bf16.gmra.mrb[0].mxu0 %v582
  %v618 = vpop.f32.mrb[0].mxu0
  %v619 = vadd.f32 0.0, %v618
  %v620 = vpop.f32.mrb[0].mxu0
  %v621 = vpop.f32.mrb[0].mxu0
  %v622 = vpop.f32.mrb[0].mxu0
  %623 = vdwg.mxu0
  %v624 = vadd.f32 %v562, %v619
  %v625 = vld [vmem:[#allocation2 + $0xc] sm:$0x3]
  %v626 = vpack.c.bf16 %v625, %v625
  %v627 = vld [vmem:[%s3 + $0x60] sm:$0xf]
  %v628 = vld [vmem:[%s3 + $0x64] sm:$0xf]
  %v629 = vld [vmem:[%s3 + $0x68] sm:$0xf]
  %v630 = vld [vmem:[%s3 + $0x6c] sm:$0xf]
  %v635 = vunpack.c.l.b16 %v627
  %v636 = vunpack.c.l.b16 %v628
  %v637 = vunpack.c.l.b16 %v629
  %v638 = vunpack.c.l.b16 %v630
  %v639 = vpack.c.b16 %v636, %v635
  %v640 = vpack.c.b16 %v638, %v637
  %v644 = vsel %vm241, %v626, 0
  %646 = vmatprep.subr.bf16.mxu0 0
  %647 = vmatpush1.bf16.msra.mxu0 %v639
  %648 = vmatprep.subr.bf16.mxu0 0
  %649 = vmatpush1.bf16.msra.mxu0 %v640
  %650 = vmatprep.subr.bf16.mxu0 0
  %651 = vmatpush1.bf16.msra.mxu0 0
  %652 = vmatprep.subr.bf16.mxu0 0
  %653 = vmatpush1.bf16.msra.mxu0 0
  %654 = vmatprep.subr.bf16.mxu0 0
  %655 = vmatpush1.bf16.msra.mxu0 0
  %656 = vmatprep.subr.bf16.mxu0 0
  %657 = vmatpush1.bf16.msra.mxu0 0
  %658 = vmatprep.subr.bf16.mxu0 0
  %659 = vmatpush1.bf16.msra.mxu0 0
  %660 = vmatprep.subr.bf16.mxu0 0
  %661 = vmatpush1.bf16.msra.mxu0 0
  %662 = vmatprep.subr.bf16.mxu0 0
  %663 = vmatpush1.bf16.msra.mxu0 0
  %664 = vmatprep.subr.bf16.mxu0 0
  %665 = vmatpush1.bf16.msra.mxu0 0
  %666 = vmatprep.subr.bf16.mxu0 0
  %667 = vmatpush1.bf16.msra.mxu0 0
  %668 = vmatprep.subr.bf16.mxu0 0
  %669 = vmatpush1.bf16.msra.mxu0 0
  %670 = vmatprep.subr.bf16.mxu0 0
  %671 = vmatpush1.bf16.msra.mxu0 0
  %672 = vmatprep.subr.bf16.mxu0 0
  %673 = vmatpush1.bf16.msra.mxu0 0
  %674 = vmatprep.subr.bf16.mxu0 0
  %675 = vmatpush1.bf16.msra.mxu0 0
  %676 = vmatprep.subr.bf16.mxu0 0
  %677 = vmatpush1.bf16.msra.mxu0 0
  %678 = vmatprep.mubr.bf16.mxu0 0
  %679 = vmatmul.mubr.bf16.gmra.mrb[0].mxu0 %v644
  %v680 = vpop.f32.mrb[0].mxu0
  %v681 = vadd.f32 0.0, %v680
  %v682 = vpop.f32.mrb[0].mxu0
  %v683 = vpop.f32.mrb[0].mxu0
  %v684 = vpop.f32.mrb[0].mxu0
  %685 = vdwg.mxu0
  %v686 = vadd.f32 %v624, %v681
  %v687 = vld [vmem:[#allocation2 + $0xe] sm:$0x3]
  %v688 = vpack.c.bf16 %v687, %v687
  %v689 = vld [vmem:[%s3 + $0x70] sm:$0xf]
  %v690 = vld [vmem:[%s3 + $0x74] sm:$0xf]
  %v691 = vld [vmem:[%s3 + $0x78] sm:$0xf]
  %v692 = vld [vmem:[%s3 + $0x7c] sm:$0xf]
  %v697 = vunpack.c.l.b16 %v689
  %v698 = vunpack.c.l.b16 %v690
  %v699 = vunpack.c.l.b16 %v691
  %v700 = vunpack.c.l.b16 %v692
  %v701 = vpack.c.b16 %v698, %v697
  %v702 = vpack.c.b16 %v700, %v699
  %v706 = vsel %vm241, %v688, 0
  %708 = vmatprep.subr.bf16.mxu0 0
  %709 = vmatpush1.bf16.msra.mxu0 %v701
  %710 = vmatprep.subr.bf16.mxu0 0
  %711 = vmatpush1.bf16.msra.mxu0 %v702
  %712 = vmatprep.subr.bf16.mxu0 0
  %713 = vmatpush1.bf16.msra.mxu0 0
  %714 = vmatprep.subr.bf16.mxu0 0
  %715 = vmatpush1.bf16.msra.mxu0 0
  %716 = vmatprep.subr.bf16.mxu0 0
  %717 = vmatpush1.bf16.msra.mxu0 0
  %718 = vmatprep.subr.bf16.mxu0 0
  %719 = vmatpush1.bf16.msra.mxu0 0
  %720 = vmatprep.subr.bf16.mxu0 0
  %721 = vmatpush1.bf16.msra.mxu0 0
  %722 = vmatprep.subr.bf16.mxu0 0
  %723 = vmatpush1.bf16.msra.mxu0 0
  %724 = vmatprep.subr.bf16.mxu0 0
  %725 = vmatpush1.bf16.msra.mxu0 0
  %726 = vmatprep.subr.bf16.mxu0 0
  %727 = vmatpush1.bf16.msra.mxu0 0
  %728 = vmatprep.subr.bf16.mxu0 0
  %729 = vmatpush1.bf16.msra.mxu0 0
  %730 = vmatprep.subr.bf16.mxu0 0
  %731 = vmatpush1.bf16.msra.mxu0 0
  %732 = vmatprep.subr.bf16.mxu0 0
  %733 = vmatpush1.bf16.msra.mxu0 0
  %734 = vmatprep.subr.bf16.mxu0 0
  %735 = vmatpush1.bf16.msra.mxu0 0
  %736 = vmatprep.subr.bf16.mxu0 0
  %737 = vmatpush1.bf16.msra.mxu0 0
  %738 = vmatprep.subr.bf16.mxu0 0
  %739 = vmatpush1.bf16.msra.mxu0 0
  %740 = vmatprep.mubr.bf16.mxu0 0
  %741 = vmatmul.mubr.bf16.gmra.mrb[0].mxu0 %v706
  %v742 = vpop.f32.mrb[0].mxu0
  %v743 = vadd.f32 0.0, %v742
  %v744 = vpop.f32.mrb[0].mxu0
  %v745 = vpop.f32.mrb[0].mxu0
  %v746 = vpop.f32.mrb[0].mxu0
  %747 = vdwg.mxu0
  %v748 = vadd.f32 %v686, %v743
  %v749 = vld [vmem:[#allocation2 + $0x10] sm:$0x3]
  %v750 = vpack.c.bf16 %v749, %v749
  %v751 = vld [vmem:[%s3 + $0x80] sm:$0xf]
  %v752 = vld [vmem:[%s3 + $0x84] sm:$0xf]
  %v753 = vld [vmem:[%s3 + $0x88] sm:$0xf]
  %v754 = vld [vmem:[%s3 + $0x8c] sm:$0xf]
  %v759 = vunpack.c.l.b16 %v751
  %v760 = vunpack.c.l.b16 %v752
  %v761 = vunpack.c.l.b16 %v753
  %v762 = vunpack.c.l.b16 %v754
  %v763 = vpack.c.b16 %v760, %v759
  %v764 = vpack.c.b16 %v762, %v761
  %v768 = vsel %vm241, %v750, 0
  %770 = vmatprep.subr.bf16.mxu0 0
  %771 = vmatpush1.bf16.msra.mxu0 %v763
  %772 = vmatprep.subr.bf16.mxu0 0
  %773 = vmatpush1.bf16.msra.mxu0 %v764
  %774 = vmatprep.subr.bf16.mxu0 0
  %775 = vmatpush1.bf16.msra.mxu0 0
  %776 = vmatprep.subr.bf16.mxu0 0
  %777 = vmatpush1.bf16.msra.mxu0 0
  %778 = vmatprep.subr.bf16.mxu0 0
  %779 = vmatpush1.bf16.msra.mxu0 0
  %780 = vmatprep.subr.bf16.mxu0 0
  %781 = vmatpush1.bf16.msra.mxu0 0
  %782 = vmatprep.subr.bf16.mxu0 0
  %783 = vmatpush1.bf16.msra.mxu0 0
  %784 = vmatprep.subr.bf16.mxu0 0
  %785 = vmatpush1.bf16.msra.mxu0 0
  %786 = vmatprep.subr.bf16.mxu0 0
  %787 = vmatpush1.bf16.msra.mxu0 0
  %788 = vmatprep.subr.bf16.mxu0 0
  %789 = vmatpush1.bf16.msra.mxu0 0
  %790 = vmatprep.subr.bf16.mxu0 0
  %791 = vmatpush1.bf16.msra.mxu0 0
  %792 = vmatprep.subr.bf16.mxu0 0
  %793 = vmatpush1.bf16.msra.mxu0 0
  %794 = vmatprep.subr.bf16.mxu0 0
  %795 = vmatpush1.bf16.msra.mxu0 0
  %796 = vmatprep.subr.bf16.mxu0 0
  %797 = vmatpush1.bf16.msra.mxu0 0
  %798 = vmatprep.subr.bf16.mxu0 0
  %799 = vmatpush1.bf16.msra.mxu0 0
  %800 = vmatprep.subr.bf16.mxu0 0
  %801 = vmatpush1.bf16.msra.mxu0 0
  %802 = vmatprep.mubr.bf16.mxu0 0
  %803 = vmatmul.mubr.bf16.gmra.mrb[0].mxu0 %v768
  %v804 = vpop.f32.mrb[0].mxu0
  %v805 = vadd.f32 0.0, %v804
  %v806 = vpop.f32.mrb[0].mxu0
  %v807 = vpop.f32.mrb[0].mxu0
  %v808 = vpop.f32.mrb[0].mxu0
  %809 = vdwg.mxu0
  %v810 = vadd.f32 %v748, %v805
  %v811 = vld [vmem:[#allocation2 + $0x12] sm:$0x3]
  %v812 = vpack.c.bf16 %v811, %v811
  %v813 = vld [vmem:[%s3 + $0x90] sm:$0xf]
  %v814 = vld [vmem:[%s3 + $0x94] sm:$0xf]
  %v815 = vld [vmem:[%s3 + $0x98] sm:$0xf]
  %v816 = vld [vmem:[%s3 + $0x9c] sm:$0xf]
  %v821 = vunpack.c.l.b16 %v813
  %v822 = vunpack.c.l.b16 %v814
  %v823 = vunpack.c.l.b16 %v815
  %v824 = vunpack.c.l.b16 %v816
  %v825 = vpack.c.b16 %v822, %v821
  %v826 = vpack.c.b16 %v824, %v823
  %v830 = vsel %vm241, %v812, 0
  %832 = vmatprep.subr.bf16.mxu0 0
  %833 = vmatpush1.bf16.msra.mxu0 %v825
  %834 = vmatprep.subr.bf16.mxu0 0
  %835 = vmatpush1.bf16.msra.mxu0 %v826
  %836 = vmatprep.subr.bf16.mxu0 0
  %837 = vmatpush1.bf16.msra.mxu0 0
  %838 = vmatprep.subr.bf16.mxu0 0
  %839 = vmatpush1.bf16.msra.mxu0 0
  %840 = vmatprep.subr.bf16.mxu0 0
  %841 = vmatpush1.bf16.msra.mxu0 0
  %842 = vmatprep.subr.bf16.mxu0 0
  %843 = vmatpush1.bf16.msra.mxu0 0
  %844 = vmatprep.subr.bf16.mxu0 0
  %845 = vmatpush1.bf16.msra.mxu0 0
  %846 = vmatprep.subr.bf16.mxu0 0
  %847 = vmatpush1.bf16.msra.mxu0 0
  %848 = vmatprep.subr.bf16.mxu0 0
  %849 = vmatpush1.bf16.msra.mxu0 0
  %850 = vmatprep.subr.bf16.mxu0 0
  %851 = vmatpush1.bf16.msra.mxu0 0
  %852 = vmatprep.subr.bf16.mxu0 0
  %853 = vmatpush1.bf16.msra.mxu0 0
  %854 = vmatprep.subr.bf16.mxu0 0
  %855 = vmatpush1.bf16.msra.mxu0 0
  %856 = vmatprep.subr.bf16.mxu0 0
  %857 = vmatpush1.bf16.msra.mxu0 0
  %858 = vmatprep.subr.bf16.mxu0 0
  %859 = vmatpush1.bf16.msra.mxu0 0
  %860 = vmatprep.subr.bf16.mxu0 0
  %861 = vmatpush1.bf16.msra.mxu0 0
  %862 = vmatprep.subr.bf16.mxu0 0
  %863 = vmatpush1.bf16.msra.mxu0 0
  %864 = vmatprep.mubr.bf16.mxu0 0
  %865 = vmatmul.mubr.bf16.gmra.mrb[0].mxu0 %v830
  %v866 = vpop.f32.mrb[0].mxu0
  %v867 = vadd.f32 0.0, %v866
  %v868 = vpop.f32.mrb[0].mxu0
  %v869 = vpop.f32.mrb[0].mxu0
  %v870 = vpop.f32.mrb[0].mxu0
  %871 = vdwg.mxu0
  %v872 = vadd.f32 %v810, %v867
  %v873 = vld [vmem:[#allocation2 + $0x14] sm:$0x3]
  %v874 = vpack.c.bf16 %v873, %v873
  %v875 = vld [vmem:[%s3 + $0xa0] sm:$0xf]
  %v876 = vld [vmem:[%s3 + $0xa4] sm:$0xf]
  %v877 = vld [vmem:[%s3 + $0xa8] sm:$0xf]
  %v878 = vld [vmem:[%s3 + $0xac] sm:$0xf]
  %v883 = vunpack.c.l.b16 %v875
  %v884 = vunpack.c.l.b16 %v876
  %v885 = vunpack.c.l.b16 %v877
  %v886 = vunpack.c.l.b16 %v878
  %v887 = vpack.c.b16 %v884, %v883
  %v888 = vpack.c.b16 %v886, %v885
  %v892 = vsel %vm241, %v874, 0
  %894 = vmatprep.subr.bf16.mxu0 0
  %895 = vmatpush1.bf16.msra.mxu0 %v887
  %896 = vmatprep.subr.bf16.mxu0 0
  %897 = vmatpush1.bf16.msra.mxu0 %v888
  %898 = vmatprep.subr.bf16.mxu0 0
  %899 = vmatpush1.bf16.msra.mxu0 0
  %900 = vmatprep.subr.bf16.mxu0 0
  %901 = vmatpush1.bf16.msra.mxu0 0
  %902 = vmatprep.subr.bf16.mxu0 0
  %903 = vmatpush1.bf16.msra.mxu0 0
  %904 = vmatprep.subr.bf16.mxu0 0
  %905 = vmatpush1.bf16.msra.mxu0 0
  %906 = vmatprep.subr.bf16.mxu0 0
  %907 = vmatpush1.bf16.msra.mxu0 0
  %908 = vmatprep.subr.bf16.mxu0 0
  %909 = vmatpush1.bf16.msra.mxu0 0
  %910 = vmatprep.subr.bf16.mxu0 0
  %911 = vmatpush1.bf16.msra.mxu0 0
  %912 = vmatprep.subr.bf16.mxu0 0
  %913 = vmatpush1.bf16.msra.mxu0 0
  %914 = vmatprep.subr.bf16.mxu0 0
  %915 = vmatpush1.bf16.msra.mxu0 0
  %916 = vmatprep.subr.bf16.mxu0 0
  %917 = vmatpush1.bf16.msra.mxu0 0
  %918 = vmatprep.subr.bf16.mxu0 0
  %919 = vmatpush1.bf16.msra.mxu0 0
  %920 = vmatprep.subr.bf16.mxu0 0
  %921 = vmatpush1.bf16.msra.mxu0 0
  %922 = vmatprep.subr.bf16.mxu0 0
  %923 = vmatpush1.bf16.msra.mxu0 0
  %924 = vmatprep.subr.bf16.mxu0 0
  %925 = vmatpush1.bf16.msra.mxu0 0
  %926 = vmatprep.mubr.bf16.mxu0 0
  %927 = vmatmul.mubr.bf16.gmra.mrb[0].mxu0 %v892
  %v928 = vpop.f32.mrb[0].mxu0
  %v929 = vadd.f32 0.0, %v928
  %v930 = vpop.f32.mrb[0].mxu0
  %v931 = vpop.f32.mrb[0].mxu0
  %v932 = vpop.f32.mrb[0].mxu0
  %933 = vdwg.mxu0
  %v934 = vadd.f32 %v872, %v929
  %v935 = vld [vmem:[#allocation2 + $0x16] sm:$0x3]
  %v936 = vpack.c.bf16 %v935, %v935
  %v937 = vld [vmem:[%s3 + $0xb0] sm:$0xf]
  %v938 = vld [vmem:[%s3 + $0xb4] sm:$0xf]
  %v939 = vld [vmem:[%s3 + $0xb8] sm:$0xf]
  %v940 = vld [vmem:[%s3 + $0xbc] sm:$0xf]
  %v945 = vunpack.c.l.b16 %v937
  %v946 = vunpack.c.l.b16 %v938
  %v947 = vunpack.c.l.b16 %v939
  %v948 = vunpack.c.l.b16 %v940
  %v949 = vpack.c.b16 %v946, %v945
  %v950 = vpack.c.b16 %v948, %v947
  %v954 = vsel %vm241, %v936, 0
  %956 = vmatprep.subr.bf16.mxu0 0
  %957 = vmatpush1.bf16.msra.mxu0 %v949
  %958 = vmatprep.subr.bf16.mxu0 0
  %959 = vmatpush1.bf16.msra.mxu0 %v950
  %960 = vmatprep.subr.bf16.mxu0 0
  %961 = vmatpush1.bf16.msra.mxu0 0
  %962 = vmatprep.subr.bf16.mxu0 0
  %963 = vmatpush1.bf16.msra.mxu0 0
  %964 = vmatprep.subr.bf16.mxu0 0
  %965 = vmatpush1.bf16.msra.mxu0 0
  %966 = vmatprep.subr.bf16.mxu0 0
  %967 = vmatpush1.bf16.msra.mxu0 0
  %968 = vmatprep.subr.bf16.mxu0 0
  %969 = vmatpush1.bf16.msra.mxu0 0
  %970 = vmatprep.subr.bf16.mxu0 0
  %971 = vmatpush1.bf16.msra.mxu0 0
  %972 = vmatprep.subr.bf16.mxu0 0
  %973 = vmatpush1.bf16.msra.mxu0 0
  %974 = vmatprep.subr.bf16.mxu0 0
  %975 = vmatpush1.bf16.msra.mxu0 0
  %976 = vmatprep.subr.bf16.mxu0 0
  %977 = vmatpush1.bf16.msra.mxu0 0
  %978 = vmatprep.subr.bf16.mxu0 0
  %979 = vmatpush1.bf16.msra.mxu0 0
  %980 = vmatprep.subr.bf16.mxu0 0
  %981 = vmatpush1.bf16.msra.mxu0 0
  %982 = vmatprep.subr.bf16.mxu0 0
  %983 = vmatpush1.bf16.msra.mxu0 0
  %984 = vmatprep.subr.bf16.mxu0 0
  %985 = vmatpush1.bf16.msra.mxu0 0
  %986 = vmatprep.subr.bf16.mxu0 0
  %987 = vmatpush1.bf16.msra.mxu0 0
  %988 = vmatprep.mubr.bf16.mxu0 0
  %989 = vmatmul.mubr.bf16.gmra.mrb[0].mxu0 %v954
  %v990 = vpop.f32.mrb[0].mxu0
  %v991 = vadd.f32 0.0, %v990
  %v992 = vpop.f32.mrb[0].mxu0
  %v993 = vpop.f32.mrb[0].mxu0
  %v994 = vpop.f32.mrb[0].mxu0
  %995 = vdwg.mxu0
  %v996 = vadd.f32 %v934, %v991
  %v997 = vld [vmem:[#allocation2 + $0x18] sm:$0x3]
  %v998 = vpack.c.bf16 %v997, %v997
  %v999 = vld [vmem:[%s3 + $0xc0] sm:$0xf]
  %v1000 = vld [vmem:[%s3 + $0xc4] sm:$0xf]
  %v1001 = vld [vmem:[%s3 + $0xc8] sm:$0xf]
  %v1002 = vld [vmem:[%s3 + $0xcc] sm:$0xf]
  %v1007 = vunpack.c.l.b16 %v999
  %v1008 = vunpack.c.l.b16 %v1000
  %v1009 = vunpack.c.l.b16 %v1001
  %v1010 = vunpack.c.l.b16 %v1002
  %v1011 = vpack.c.b16 %v1008, %v1007
  %v1012 = vpack.c.b16 %v1010, %v1009
  %v1016 = vsel %vm241, %v998, 0
  %1018 = vmatprep.subr.bf16.mxu0 0
  %1019 = vmatpush1.bf16.msra.mxu0 %v1011
  %1020 = vmatprep.subr.bf16.mxu0 0
  %1021 = vmatpush1.bf16.msra.mxu0 %v1012
  %1022 = vmatprep.subr.bf16.mxu0 0
  %1023 = vmatpush1.bf16.msra.mxu0 0
  %1024 = vmatprep.subr.bf16.mxu0 0
  %1025 = vmatpush1.bf16.msra.mxu0 0
  %1026 = vmatprep.subr.bf16.mxu0 0
  %1027 = vmatpush1.bf16.msra.mxu0 0
  %1028 = vmatprep.subr.bf16.mxu0 0
  %1029 = vmatpush1.bf16.msra.mxu0 0
  %1030 = vmatprep.subr.bf16.mxu0 0
  %1031 = vmatpush1.bf16.msra.mxu0 0
  %1032 = vmatprep.subr.bf16.mxu0 0
  %1033 = vmatpush1.bf16.msra.mxu0 0
  %1034 = vmatprep.subr.bf16.mxu0 0
  %1035 = vmatpush1.bf16.msra.mxu0 0
  %1036 = vmatprep.subr.bf16.mxu0 0
  %1037 = vmatpush1.bf16.msra.mxu0 0
  %1038 = vmatprep.subr.bf16.mxu0 0
  %1039 = vmatpush1.bf16.msra.mxu0 0
  %1040 = vmatprep.subr.bf16.mxu0 0
  %1041 = vmatpush1.bf16.msra.mxu0 0
  %1042 = vmatprep.subr.bf16.mxu0 0
  %1043 = vmatpush1.bf16.msra.mxu0 0
  %1044 = vmatprep.subr.bf16.mxu0 0
  %1045 = vmatpush1.bf16.msra.mxu0 0
  %1046 = vmatprep.subr.bf16.mxu0 0
  %1047 = vmatpush1.bf16.msra.mxu0 0
  %1048 = vmatprep.subr.bf16.mxu0 0
  %1049 = vmatpush1.bf16.msra.mxu0 0
  %1050 = vmatprep.mubr.bf16.mxu0 0
  %1051 = vmatmul.mubr.bf16.gmra.mrb[0].mxu0 %v1016
  %v1052 = vpop.f32.mrb[0].mxu0
  %v1053 = vadd.f32 0.0, %v1052
  %v1054 = vpop.f32.mrb[0].mxu0
  %v1055 = vpop.f32.mrb[0].mxu0
  %v1056 = vpop.f32.mrb[0].mxu0
  %1057 = vdwg.mxu0
  %v1058 = vadd.f32 %v996, %v1053
  %v1059 = vld [vmem:[#allocation2 + $0x1a] sm:$0x3]
  %v1060 = vpack.c.bf16 %v1059, %v1059
  %v1061 = vld [vmem:[%s3 + $0xd0] sm:$0xf]
  %v1062 = vld [vmem:[%s3 + $0xd4] sm:$0xf]
  %v1063 = vld [vmem:[%s3 + $0xd8] sm:$0xf]
  %v1064 = vld [vmem:[%s3 + $0xdc] sm:$0xf]
  %v1069 = vunpack.c.l.b16 %v1061
  %v1070 = vunpack.c.l.b16 %v1062
  %v1071 = vunpack.c.l.b16 %v1063
  %v1072 = vunpack.c.l.b16 %v1064
  %v1073 = vpack.c.b16 %v1070, %v1069
  %v1074 = vpack.c.b16 %v1072, %v1071
  %v1078 = vsel %vm241, %v1060, 0
  %1080 = vmatprep.subr.bf16.mxu0 0
  %1081 = vmatpush1.bf16.msra.mxu0 %v1073
  %1082 = vmatprep.subr.bf16.mxu0 0
  %1083 = vmatpush1.bf16.msra.mxu0 %v1074
  %1084 = vmatprep.subr.bf16.mxu0 0
  %1085 = vmatpush1.bf16.msra.mxu0 0
  %1086 = vmatprep.subr.bf16.mxu0 0
  %1087 = vmatpush1.bf16.msra.mxu0 0
  %1088 = vmatprep.subr.bf16.mxu0 0
  %1089 = vmatpush1.bf16.msra.mxu0 0
  %1090 = vmatprep.subr.bf16.mxu0 0
  %1091 = vmatpush1.bf16.msra.mxu0 0
  %1092 = vmatprep.subr.bf16.mxu0 0
  %1093 = vmatpush1.bf16.msra.mxu0 0
  %1094 = vmatprep.subr.bf16.mxu0 0
  %1095 = vmatpush1.bf16.msra.mxu0 0
  %1096 = vmatprep.subr.bf16.mxu0 0
  %1097 = vmatpush1.bf16.msra.mxu0 0
  %1098 = vmatprep.subr.bf16.mxu0 0
  %1099 = vmatpush1.bf16.msra.mxu0 0
  %1100 = vmatprep.subr.bf16.mxu0 0
  %1101 = vmatpush1.bf16.msra.mxu0 0
  %1102 = vmatprep.subr.bf16.mxu0 0
  %1103 = vmatpush1.bf16.msra.mxu0 0
  %1104 = vmatprep.subr.bf16.mxu0 0
  %1105 = vmatpush1.bf16.msra.mxu0 0
  %1106 = vmatprep.subr.bf16.mxu0 0
  %1107 = vmatpush1.bf16.msra.mxu0 0
  %1108 = vmatprep.subr.bf16.mxu0 0
  %1109 = vmatpush1.bf16.msra.mxu0 0
  %1110 = vmatprep.subr.bf16.mxu0 0
  %1111 = vmatpush1.bf16.msra.mxu0 0
  %1112 = vmatprep.mubr.bf16.mxu0 0
  %1113 = vmatmul.mubr.bf16.gmra.mrb[0].mxu0 %v1078
  %v1114 = vpop.f32.mrb[0].mxu0
  %v1115 = vadd.f32 0.0, %v1114
  %v1116 = vpop.f32.mrb[0].mxu0
  %v1117 = vpop.f32.mrb[0].mxu0
  %v1118 = vpop.f32.mrb[0].mxu0
  %1119 = vdwg.mxu0
  %v1120 = vadd.f32 %v1058, %v1115
  %v1121 = vld [vmem:[#allocation2 + $0x1c] sm:$0x3]
  %v1122 = vpack.c.bf16 %v1121, %v1121
  %v1123 = vld [vmem:[%s3 + $0xe0] sm:$0xf]
  %v1124 = vld [vmem:[%s3 + $0xe4] sm:$0xf]
  %v1125 = vld [vmem:[%s3 + $0xe8] sm:$0xf]
  %v1126 = vld [vmem:[%s3 + $0xec] sm:$0xf]
  %v1131 = vunpack.c.l.b16 %v1123
  %v1132 = vunpack.c.l.b16 %v1124
  %v1133 = vunpack.c.l.b16 %v1125
  %v1134 = vunpack.c.l.b16 %v1126
  %v1135 = vpack.c.b16 %v1132, %v1131
  %v1136 = vpack.c.b16 %v1134, %v1133
  %v1140 = vsel %vm241, %v1122, 0
  %1142 = vmatprep.subr.bf16.mxu0 0
  %1143 = vmatpush1.bf16.msra.mxu0 %v1135
  %1144 = vmatprep.subr.bf16.mxu0 0
  %1145 = vmatpush1.bf16.msra.mxu0 %v1136
  %1146 = vmatprep.subr.bf16.mxu0 0
  %1147 = vmatpush1.bf16.msra.mxu0 0
  %1148 = vmatprep.subr.bf16.mxu0 0
  %1149 = vmatpush1.bf16.msra.mxu0 0
  %1150 = vmatprep.subr.bf16.mxu0 0
  %1151 = vmatpush1.bf16.msra.mxu0 0
  %1152 = vmatprep.subr.bf16.mxu0 0
  %1153 = vmatpush1.bf16.msra.mxu0 0
  %1154 = vmatprep.subr.bf16.mxu0 0
  %1155 = vmatpush1.bf16.msra.mxu0 0
  %1156 = vmatprep.subr.bf16.mxu0 0
  %1157 = vmatpush1.bf16.msra.mxu0 0
  %1158 = vmatprep.subr.bf16.mxu0 0
  %1159 = vmatpush1.bf16.msra.mxu0 0
  %1160 = vmatprep.subr.bf16.mxu0 0
  %1161 = vmatpush1.bf16.msra.mxu0 0
  %1162 = vmatprep.subr.bf16.mxu0 0
  %1163 = vmatpush1.bf16.msra.mxu0 0
  %1164 = vmatprep.subr.bf16.mxu0 0
  %1165 = vmatpush1.bf16.msra.mxu0 0
  %1166 = vmatprep.subr.bf16.mxu0 0
  %1167 = vmatpush1.bf16.msra.mxu0 0
  %1168 = vmatprep.subr.bf16.mxu0 0
  %1169 = vmatpush1.bf16.msra.mxu0 0
  %1170 = vmatprep.subr.bf16.mxu0 0
  %1171 = vmatpush1.bf16.msra.mxu0 0
  %1172 = vmatprep.subr.bf16.mxu0 0
  %1173 = vmatpush1.bf16.msra.mxu0 0
  %1174 = vmatprep.mubr.bf16.mxu0 0
  %1175 = vmatmul.mubr.bf16.gmra.mrb[0].mxu0 %v1140
  %v1176 = vpop.f32.mrb[0].mxu0
  %v1177 = vadd.f32 0.0, %v1176
  %v1178 = vpop.f32.mrb[0].mxu0
  %v1179 = vpop.f32.mrb[0].mxu0
  %v1180 = vpop.f32.mrb[0].mxu0
  %1181 = vdwg.mxu0
  %v1182 = vadd.f32 %v1120, %v1177
  %v1183 = vld [vmem:[#allocation2 + $0x1e] sm:$0x3]
  %v1184 = vpack.c.bf16 %v1183, %v1183
  %v1185 = vld [vmem:[%s3 + $0xf0] sm:$0xf]
  %v1186 = vld [vmem:[%s3 + $0xf4] sm:$0xf]
  %v1187 = vld [vmem:[%s3 + $0xf8] sm:$0xf]
  %v1188 = vld [vmem:[%s3 + $0xfc] sm:$0xf]
  %v1193 = vunpack.c.l.b16 %v1185
  %v1194 = vunpack.c.l.b16 %v1186
  %v1195 = vunpack.c.l.b16 %v1187
  %v1196 = vunpack.c.l.b16 %v1188
  %v1197 = vpack.c.b16 %v1194, %v1193
  %v1198 = vpack.c.b16 %v1196, %v1195
  %v1202 = vsel %vm241, %v1184, 0
  %1204 = vmatprep.subr.bf16.mxu0 0
  %1205 = vmatpush1.bf16.msra.mxu0 %v1197
  %1206 = vmatprep.subr.bf16.mxu0 0
  %1207 = vmatpush1.bf16.msra.mxu0 %v1198
  %1208 = vmatprep.subr.bf16.mxu0 0
  %1209 = vmatpush1.bf16.msra.mxu0 0
  %1210 = vmatprep.subr.bf16.mxu0 0
  %1211 = vmatpush1.bf16.msra.mxu0 0
  %1212 = vmatprep.subr.bf16.mxu0 0
  %1213 = vmatpush1.bf16.msra.mxu0 0
  %1214 = vmatprep.subr.bf16.mxu0 0
  %1215 = vmatpush1.bf16.msra.mxu0 0
  %1216 = vmatprep.subr.bf16.mxu0 0
  %1217 = vmatpush1.bf16.msra.mxu0 0
  %1218 = vmatprep.subr.bf16.mxu0 0
  %1219 = vmatpush1.bf16.msra.mxu0 0
  %1220 = vmatprep.subr.bf16.mxu0 0
  %1221 = vmatpush1.bf16.msra.mxu0 0
  %1222 = vmatprep.subr.bf16.mxu0 0
  %1223 = vmatpush1.bf16.msra.mxu0 0
  %1224 = vmatprep.subr.bf16.mxu0 0
  %1225 = vmatpush1.bf16.msra.mxu0 0
  %1226 = vmatprep.subr.bf16.mxu0 0
  %1227 = vmatpush1.bf16.msra.mxu0 0
  %1228 = vmatprep.subr.bf16.mxu0 0
  %1229 = vmatpush1.bf16.msra.mxu0 0
  %1230 = vmatprep.subr.bf16.mxu0 0
  %1231 = vmatpush1.bf16.msra.mxu0 0
  %1232 = vmatprep.subr.bf16.mxu0 0
  %1233 = vmatpush1.bf16.msra.mxu0 0
  %1234 = vmatprep.subr.bf16.mxu0 0
  %1235 = vmatpush1.bf16.msra.mxu0 0
  %1236 = vmatprep.mubr.bf16.mxu0 0
  %1237 = vmatmul.mubr.bf16.gmra.mrb[0].mxu0 %v1202
  %v1238 = vpop.f32.mrb[0].mxu0
  %v1239 = vadd.f32 0.0, %v1238
  %v1240 = vpop.f32.mrb[0].mxu0
  %v1241 = vpop.f32.mrb[0].mxu0
  %v1242 = vpop.f32.mrb[0].mxu0
  %1243 = vdwg.mxu0
  %v1244 = vadd.f32 %v1182, %v1239
  %v1245 = vand.u32 2147483647, %v1244
  %v1246 = vsub.f32 0.0, %v1245
  %v1247 = vmul.f32 %v1246, 1.442695
  %v1248 = vpow.pop %v1247
  %v1249 = vadd.f32 %v1248, 1.0
  %v1250 = vrcp.pop %v1249
  %vm1251 = vcmp.ge.f32.partialorder %v1244, 0.0
  %v1252 = vsub.f32 1.0, %v1250
  %v1253 = vsel %vm1251, %v1250, %v1252
  %v1254 = vmax.f32 %v1253, 0.0
  %v1255 = vmin.f32 %v1254, 1.0
  %v1256 = vlaneseq
  %v1257 = vand.u32 %v1256, 127
  %vm1258 = vcmp.eq.s32.totalorder %v1257, 0
  %v1259 = vsel %vm1258, %v1255, %v1244
  %vm1260 = vcmask 82944
  %1261 = vst.msk [vmem:[%s5] sm:$0x3] %vm1260, %v1259
  // Predicated region
  $region22: #{discriminator_forward.5} parent=0 // pred_check
    _
  $region23: #{discriminator_forward.5} parent=0 // pred_check_branch
    %1263 = sbr.rel (0) target = $region25
  $region24: #{discriminator_forward.5} parent=0 // pred_region
    _
  $region25: #{discriminator_forward.5} parent=0 // pred_fallthru
    _
  // Predicated region
  $region26: #{discriminator_forward.5} parent=0 // pred_check
    _
  $region27: #{discriminator_forward.5} parent=0 // pred_check_branch
    %1265 = sbr.rel (0) target = $region29
  $region28: #{discriminator_forward.5} parent=0 // pred_region
    _
  $region29: #{discriminator_forward.5} parent=0 // pred_fallthru
    _

</llo_original>
